<compile_context>
chip_gen: v7x
topology: tpu7x:2x2x1
jax: 0.10.0
libtpu: 0.0.40
codegen_flags: <defaults>
</compile_context>

<pallas_src>
import math

import jax
import jax.numpy as jnp
from jax.experimental import pallas as pl
from jax.experimental.pallas import tpu as pltpu

INPUT_SIZE = 1
HIDDEN = 20
NUM_LAYERS = 2  # fixed at 2 stacked layers, matching num_stacked_layers


# --------------------------------------------------------------------------------------
# Kernel
# --------------------------------------------------------------------------------------
def ensemble_kernel(x_ref, win_ref, bin_ref, w0_ref, w1_ref, b1_ref,
                    wfc_ref, bfc_ref, out_ref):
    T, B = x_ref.shape
    H5 = w0_ref.shape[1]
    H = H5 // 5
    H2, H3 = 2 * H, 3 * H

    # ---- preamble: runs once, off the serial recurrence path --------------------------
    x = x_ref[...]                                   # (T, B) float32
    w_in = win_ref[...]                              # (1, 5H)   (input_size == 1)
    b_in = bin_ref[...]                              # (1, 5H)   layer-0 biases (LSTM ++ RNN)
    w0 = w0_ref[...]                                 # (2H, 5H)  block-diag recurrent weights, layer 0
    w1 = w1_ref[...]                                 # (4H, 5H)  block weights, layer 1 (ih + hh)
    b1 = jnp.broadcast_to(b1_ref[...], (B, H5))      # hoisted: no per-step re-broadcast

    # Input projection table for ALL timesteps at once. input_size == 1 so this is a
    # broadcast-multiply (no MXU needed); layer-0 biases are folded in here.
    xproj = x[:, :, None] * w_in + b_in              # (T, B, 5H)

    zeros = jnp.zeros((B, H), jnp.float32)           # h0 / c0 are zeros in the PyTorch forward
    hl0, cl0, hl1, cl1, hr0, hr1 = zeros, zeros, zeros, zeros, zeros, zeros

    # Fully-unrolled time loop (T is small and static): exposes both recurrent chains to the
    # scheduler and removes all per-step loop/branch/dynamic-slice overhead.
    for t in range(T):
        # ----- layer 0: ONE fused matmul -> LSTM gates [i|f|o|g] ++ RNN pre-activation -----
        g0 = xproj[t] + jnp.dot(jnp.concatenate([hl0, hr0], axis=1), w0,
                                preferred_element_type=jnp.float32)
        s0 = jax.nn.sigmoid(g0[:, :H3])              # i | f | o   (single sigmoid call)
        t0 = jnp.tanh(g0[:, H3:])                    # g | rnn     (single tanh call)
        cl0 = s0[:, H:H2] * cl0 + s0[:, :H] * t0[:, :H]
        hl0 = s0[:, H2:H3] * jnp.tanh(cl0)
        hr0 = t0[:, H:]

        # ----- layer 1: ONE fused matmul (LSTM ih+hh and RNN ih+hh blocks) -----
        g1 = b1 + jnp.dot(jnp.concatenate([hl0, hl1, hr0, hr1], axis=1), w1,
                          preferred_element_type=jnp.float32)
        s1 = jax.nn.sigmoid(g1[:, :H3])
        t1 = jnp.tanh(g1[:, H3:])
        cl1 = s1[:, H:H2] * cl1 + s1[:, :H] * t1[:, :H]
        hl1 = s1[:, H2:H3] * jnp.tanh(cl1)
        hr1 = t1[:, H:]

    # Fused FC heads + ensemble average (0.5 folded into wfc/bfc) + ReLU.
    # (Dropout modules exist in the PyTorch classes but are never applied in forward.)
    combined = jnp.dot(jnp.concatenate([hl1, hr1], axis=1), wfc_ref[...],
                       preferred_element_type=jnp.float32) + bfc_ref[...]
    out_ref[...] = jnp.maximum(combined, 0.0).astype(out_ref.dtype)


@jax.jit
def ensemble_forward(x, win, bin_, w0, w1, b1, wfc, bfc):
    B, T, I = x.shape
    assert I == 1, "module fixes input_size=1"
    # Layout plumbing only: squeeze I and present x as a (T, B) slab.
    x_tb = jnp.transpose(x[:, :, 0])
    return pl.pallas_call(
        ensemble_kernel,
        out_shape=jax.ShapeDtypeStruct((B, 1), jnp.float32),
    )(x_tb, win, bin_, w0, w1, b1, wfc, bfc)


# --------------------------------------------------------------------------------------
# Parameters (PyTorch-style raw params) and fusion into kernel layout
# --------------------------------------------------------------------------------------
def make_raw_params(key, input_size=INPUT_SIZE, hidden=HIDDEN):
    """Deterministic PyTorch-style uniform(-1/sqrt(H), 1/sqrt(H)) init, PyTorch layouts."""
    bound = 1.0 / math.sqrt(hidden)
    keys = iter(jax.random.split(key, 24))

    def u(shape):
        return jax.random.uniform(next(keys), shape, jnp.float32, -bound, bound)

    lstm, rnn = [], []
    for layer in range(NUM_LAYERS):
        in_dim = input_size if layer == 0 else hidden
        lstm.append((u((4 * hidden, in_dim)), u((4 * hidden, hidden)),
                     u((4 * hidden,)), u((4 * hidden,))))
    for layer in range(NUM_LAYERS):
        in_dim = input_size if layer == 0 else hidden
        rnn.append((u((hidden, in_dim)), u((hidden, hidden)),
                    u((hidden,)), u((hidden,))))
    return {
        "lstm": lstm, "rnn": rnn,
        "fc_lstm_w": u((1, hidden)), "fc_lstm_b": u((1,)),
        "fc_rnn_w": u((1, hidden)), "fc_rnn_b": u((1,)),
    }


def fuse_params(raw, hidden=HIDDEN):
    """Build the fused block weights used by the kernel.

    Gate order is permuted from PyTorch [i,f,g,o] to [i,f,o,g] (applied consistently to
    w_ih, w_hh and the summed bias). Column layout of every fused gate matrix is
    [LSTM i|f|o|g (4H) , RNN (H)]; LSTM and RNN blocks are strictly block-diagonal.
    """
    H = hidden
    perm = jnp.concatenate([jnp.arange(0, H), jnp.arange(H, 2 * H),
                            jnp.arange(3 * H, 4 * H), jnp.arange(2 * H, 3 * H)])

    (lw_ih0, lw_hh0, lb_ih0, lb_hh0), (lw_ih1, lw_hh1, lb_ih1, lb_hh1) = raw["lstm"]
    (rw_ih0, rw_hh0, rb_ih0, rb_hh0), (rw_ih1, rw_hh1, rb_ih1, rb_hh1) = raw["rnn"]

    lw_ih0p, lw_hh0p, lb0p = lw_ih0[perm], lw_hh0[perm], (lb_ih0 + lb_hh0)[perm]
    lw_ih1p, lw_hh1p, lb1p = lw_ih1[perm], lw_hh1[perm], (lb_ih1 + lb_hh1)[perm]
    rb0 = rb_ih0 + rb_hh0
    rb1 = rb_ih1 + rb_hh1

    # Layer-0 input projection (I, 5H) with layer-0 biases folded in.
    win = jnp.concatenate([lw_ih0p.T, rw_ih0.T], axis=1)            # (1, 5H)
    bin_ = jnp.concatenate([lb0p, rb0]).reshape(1, 5 * H)

    # Layer-0 recurrent block-diagonal weights: rows [hl0 | hr0].
    w0 = jnp.zeros((2 * H, 5 * H), jnp.float32)
    w0 = w0.at[0:H, 0:4 * H].set(lw_hh0p.T)
    w0 = w0.at[H:2 * H, 4 * H:5 * H].set(rw_hh0.T)

    # Layer-1 block weights: rows [hl0_new | hl1 | hr0_new | hr1].
    w1 = jnp.zeros((4 * H, 5 * H), jnp.float32)
    w1 = w1.at[0:H, 0:4 * H].set(lw_ih1p.T)
    w1 = w1.at[H:2 * H, 0:4 * H].set(lw_hh1p.T)
    w1 = w1.at[2 * H:3 * H, 4 * H:5 * H].set(rw_ih1.T)
    w1 = w1.at[3 * H:4 * H, 4 * H:5 * H].set(rw_hh1.T)
    b1 = jnp.concatenate([lb1p, rb1]).reshape(1, 5 * H)

    # Fused FC heads with the 0.5 ensemble average folded in.
    wfc = 0.5 * jnp.concatenate([raw["fc_lstm_w"].T, raw["fc_rnn_w"].T], axis=0)  # (2H, 1)
    bfc = (0.5 * (raw["fc_lstm_b"] + raw["fc_rnn_b"])).reshape(1, 1)

    return win, bin_, w0, w1, b1, wfc, bfc


# --------------------------------------------------------------------------------------
# Pure-JAX reference (PyTorch semantics) for validation
# --------------------------------------------------------------------------------------
def reference_forward(x, raw, hidden=HIDDEN):
    B, T, _ = x.shape
    H = hidden

    def lstm_layer(seq, w_ih, w_hh, b_ih, b_hh):
        h = jnp.zeros((B, H), jnp.float32)
        c = jnp.zeros((B, H), jnp.float32)
        outs = []
        for t in range(T):
            g = seq[:, t, :] @ w_ih.T + h @ w_hh.T + b_ih + b_hh
            i = jax.nn.sigmoid(g[:, 0:H])
            f = jax.nn.sigmoid(g[:, H:2 * H])
            gg = jnp.tanh(g[:, 2 * H:3 * H])
            o = jax.nn.sigmoid(g[:, 3 * H:4 * H])
            c = f * c + i * gg
            h = o * jnp.tanh(c)
            outs.append(h)
        return jnp.stack(outs, axis=1)

    def rnn_layer(seq, w_ih, w_hh, b_ih, b_hh):
        h = jnp.zeros((B, H), jnp.float32)
        outs = []
        for t in range(T):
            h = jnp.tanh(seq[:, t, :] @ w_ih.T + h @ w_hh.T + b_ih + b_hh)
            outs.append(h)
        return jnp.stack(outs, axis=1)

    l_seq = x
    for layer in range(NUM_LAYERS):
        l_seq = lstm_layer(l_seq, *raw["lstm"][layer])
    r_seq = x
    for layer in range(NUM_LAYERS):
        r_seq = rnn_layer(r_seq, *raw["rnn"][layer])

    lstm_out = l_seq[:, -1, :] @ raw["fc_lstm_w"].T + raw["fc_lstm_b"]
    rnn_out = r_seq[:, -1, :] @ raw["fc_rnn_w"].T + raw["fc_rnn_b"]
    return jax.nn.relu((rnn_out + lstm_out) * 0.5)


# --------------------------------------------------------------------------------------
if __name__ == "__main__":
    key = jax.random.PRNGKey(0)
    pkey, xkey = jax.random.split(key)

    B, T, I = 8, 8, INPUT_SIZE   # batch padded to a full sublane group, seq=8, scalar input
    x = jax.random.normal(xkey, (B, T, I), jnp.float32)

    raw = make_raw_params(pkey)
    fused = fuse_params(raw)

    out = ensemble_forward(x, *fused)
    out = jax.block_until_ready(out)

    ref = reference_forward(x, raw)

    assert out.shape == (B, 1)
    assert bool(jnp.all(jnp.isfinite(out)))
    assert bool(jnp.all(out >= 0.0))                       # ReLU output
    assert bool(jnp.allclose(out, ref, rtol=1e-3, atol=1e-3))
    print("KERNEL_OK")
</pallas_src>

<mosaic_0001>
module attributes {stable_mosaic.version = 11 : i64} {
  func.func @ensemble_kernel(%arg0: memref<8x8xf32, #tpu.memory_space<vmem>>, %arg1: memref<1x100xf32, #tpu.memory_space<vmem>>, %arg2: memref<1x100xf32, #tpu.memory_space<vmem>>, %arg3: memref<40x100xf32, #tpu.memory_space<vmem>>, %arg4: memref<80x100xf32, #tpu.memory_space<vmem>>, %arg5: memref<1x100xf32, #tpu.memory_space<vmem>>, %arg6: memref<40x1xf32, #tpu.memory_space<vmem>>, %arg7: memref<1x1xf32, #tpu.memory_space<vmem>>, %arg8: memref<8x1xf32, #tpu.memory_space<vmem>>) attributes {dimension_semantics = [], scalar_prefetch = 0 : i64, scratch_operands = 0 : i64, tpu.core_type = #tpu.core_type<tc>} {
    %c0 = arith.constant 0 : index
    %c0_0 = arith.constant 0 : index
    %0 = vector.load %arg0[%c0, %c0_0] : memref<8x8xf32, #tpu.memory_space<vmem>>, vector<8x8xf32>
    %c0_1 = arith.constant 0 : index
    %c0_2 = arith.constant 0 : index
    %1 = vector.load %arg1[%c0_1, %c0_2] : memref<1x100xf32, #tpu.memory_space<vmem>>, vector<1x100xf32>
    %c0_3 = arith.constant 0 : index
    %c0_4 = arith.constant 0 : index
    %2 = vector.load %arg2[%c0_3, %c0_4] : memref<1x100xf32, #tpu.memory_space<vmem>>, vector<1x100xf32>
    %c0_5 = arith.constant 0 : index
    %c0_6 = arith.constant 0 : index
    %3 = vector.load %arg3[%c0_5, %c0_6] : memref<40x100xf32, #tpu.memory_space<vmem>>, vector<40x100xf32>
    %c0_7 = arith.constant 0 : index
    %c0_8 = arith.constant 0 : index
    %4 = vector.load %arg4[%c0_7, %c0_8] : memref<80x100xf32, #tpu.memory_space<vmem>>, vector<80x100xf32>
    %c0_9 = arith.constant 0 : index
    %c0_10 = arith.constant 0 : index
    %5 = vector.load %arg5[%c0_9, %c0_10] : memref<1x100xf32, #tpu.memory_space<vmem>>, vector<1x100xf32>
    %6 = vector.shape_cast %5 : vector<1x100xf32> to vector<1x100xf32>
    %7 = vector.broadcast %6 : vector<1x100xf32> to vector<8x100xf32>
    %8 = vector.shape_cast %0 : vector<8x8xf32> to vector<8x8x1xf32>
    %9 = vector.shape_cast %1 : vector<1x100xf32> to vector<1x1x100xf32>
    %10 = vector.broadcast %8 : vector<8x8x1xf32> to vector<8x8x100xf32>
    %11 = vector.broadcast %9 : vector<1x1x100xf32> to vector<8x8x100xf32>
    %12 = arith.mulf %10, %11 : vector<8x8x100xf32>
    %13 = vector.shape_cast %2 : vector<1x100xf32> to vector<1x1x100xf32>
    %14 = vector.broadcast %13 : vector<1x1x100xf32> to vector<8x8x100xf32>
    %15 = arith.addf %12, %14 : vector<8x8x100xf32>
    %cst = arith.constant 0.000000e+00 : f32
    %16 = vector.broadcast %cst : f32 to vector<8x20xf32>
    %17 = vector.extract_strided_slice %15 {offsets = [0, 0, 0], sizes = [1, 8, 100], strides = [1, 1, 1]} : vector<8x8x100xf32> to vector<1x8x100xf32>
    %18 = vector.shape_cast %17 : vector<1x8x100xf32> to vector<8x100xf32>
    %19 = tpu.concatenate %16, %16 in 1 : vector<8x20xf32>, vector<8x20xf32> -> vector<8x40xf32>
    %cst_11 = arith.constant dense<0.000000e+00> : vector<8x100xf32>
    %20 = tpu.matmul %19, %3, %cst_11 {dimension_numbers = #tpu.dot_dimension_numbers<[1], [0], [0], [1], [0, 0, 1, 1], [], []>} : vector<8x40xf32>, vector<40x100xf32>, vector<8x100xf32> -> vector<8x100xf32>
    %21 = arith.addf %18, %20 : vector<8x100xf32>
    %22 = vector.extract_strided_slice %21 {offsets = [0, 0], sizes = [8, 60], strides = [1, 1]} : vector<8x100xf32> to vector<8x60xf32>
    %23 = arith.negf %22 : vector<8x60xf32>
    %24 = math.exp %23 : vector<8x60xf32>
    %cst_12 = arith.constant 1.000000e+00 : f32
    %25 = vector.broadcast %cst_12 : f32 to vector<8x60xf32>
    %26 = arith.addf %25, %24 : vector<8x60xf32>
    %27 = arith.divf %25, %26 : vector<8x60xf32>
    %28 = vector.extract_strided_slice %21 {offsets = [0, 60], sizes = [8, 40], strides = [1, 1]} : vector<8x100xf32> to vector<8x40xf32>
    %29 = math.tanh %28 : vector<8x40xf32>
    %30 = vector.extract_strided_slice %27 {offsets = [0, 20], sizes = [8, 20], strides = [1, 1]} : vector<8x60xf32> to vector<8x20xf32>
    %31 = arith.mulf %30, %16 : vector<8x20xf32>
    %32 = vector.extract_strided_slice %27 {offsets = [0, 0], sizes = [8, 20], strides = [1, 1]} : vector<8x60xf32> to vector<8x20xf32>
    %33 = vector.extract_strided_slice %29 {offsets = [0, 0], sizes = [8, 20], strides = [1, 1]} : vector<8x40xf32> to vector<8x20xf32>
    %34 = arith.mulf %32, %33 : vector<8x20xf32>
    %35 = arith.addf %31, %34 : vector<8x20xf32>
    %36 = vector.extract_strided_slice %27 {offsets = [0, 40], sizes = [8, 20], strides = [1, 1]} : vector<8x60xf32> to vector<8x20xf32>
    %37 = math.tanh %35 : vector<8x20xf32>
    %38 = arith.mulf %36, %37 : vector<8x20xf32>
    %39 = vector.extract_strided_slice %29 {offsets = [0, 20], sizes = [8, 20], strides = [1, 1]} : vector<8x40xf32> to vector<8x20xf32>
    %40 = tpu.concatenate %38, %16, %39, %16 in 1 : vector<8x20xf32>, vector<8x20xf32>, vector<8x20xf32>, vector<8x20xf32> -> vector<8x80xf32>
    %cst_13 = arith.constant dense<0.000000e+00> : vector<8x100xf32>
    %41 = tpu.matmul %40, %4, %cst_13 {dimension_numbers = #tpu.dot_dimension_numbers<[1], [0], [0], [1], [0, 0, 1, 1], [], []>} : vector<8x80xf32>, vector<80x100xf32>, vector<8x100xf32> -> vector<8x100xf32>
    %42 = arith.addf %7, %41 : vector<8x100xf32>
    %43 = vector.extract_strided_slice %42 {offsets = [0, 0], sizes = [8, 60], strides = [1, 1]} : vector<8x100xf32> to vector<8x60xf32>
    %44 = arith.negf %43 : vector<8x60xf32>
    %45 = math.exp %44 : vector<8x60xf32>
    %cst_14 = arith.constant 1.000000e+00 : f32
    %46 = vector.broadcast %cst_14 : f32 to vector<8x60xf32>
    %47 = arith.addf %46, %45 : vector<8x60xf32>
    %48 = arith.divf %46, %47 : vector<8x60xf32>
    %49 = vector.extract_strided_slice %42 {offsets = [0, 60], sizes = [8, 40], strides = [1, 1]} : vector<8x100xf32> to vector<8x40xf32>
    %50 = math.tanh %49 : vector<8x40xf32>
    %51 = vector.extract_strided_slice %48 {offsets = [0, 20], sizes = [8, 20], strides = [1, 1]} : vector<8x60xf32> to vector<8x20xf32>
    %52 = arith.mulf %51, %16 : vector<8x20xf32>
    %53 = vector.extract_strided_slice %48 {offsets = [0, 0], sizes = [8, 20], strides = [1, 1]} : vector<8x60xf32> to vector<8x20xf32>
    %54 = vector.extract_strided_slice %50 {offsets = [0, 0], sizes = [8, 20], strides = [1, 1]} : vector<8x40xf32> to vector<8x20xf32>
    %55 = arith.mulf %53, %54 : vector<8x20xf32>
    %56 = arith.addf %52, %55 : vector<8x20xf32>
    %57 = vector.extract_strided_slice %48 {offsets = [0, 40], sizes = [8, 20], strides = [1, 1]} : vector<8x60xf32> to vector<8x20xf32>
    %58 = math.tanh %56 : vector<8x20xf32>
    %59 = arith.mulf %57, %58 : vector<8x20xf32>
    %60 = vector.extract_strided_slice %50 {offsets = [0, 20], sizes = [8, 20], strides = [1, 1]} : vector<8x40xf32> to vector<8x20xf32>
    %61 = vector.extract_strided_slice %15 {offsets = [1, 0, 0], sizes = [1, 8, 100], strides = [1, 1, 1]} : vector<8x8x100xf32> to vector<1x8x100xf32>
    %62 = vector.shape_cast %61 : vector<1x8x100xf32> to vector<8x100xf32>
    %63 = tpu.concatenate %38, %39 in 1 : vector<8x20xf32>, vector<8x20xf32> -> vector<8x40xf32>
    %cst_15 = arith.constant dense<0.000000e+00> : vector<8x100xf32>
    %64 = tpu.matmul %63, %3, %cst_15 {dimension_numbers = #tpu.dot_dimension_numbers<[1], [0], [0], [1], [0, 0, 1, 1], [], []>} : vector<8x40xf32>, vector<40x100xf32>, vector<8x100xf32> -> vector<8x100xf32>
    %65 = arith.addf %62, %64 : vector<8x100xf32>
    %66 = vector.extract_strided_slice %65 {offsets = [0, 0], sizes = [8, 60], strides = [1, 1]} : vector<8x100xf32> to vector<8x60xf32>
    %67 = arith.negf %66 : vector<8x60xf32>
    %68 = math.exp %67 : vector<8x60xf32>
    %cst_16 = arith.constant 1.000000e+00 : f32
    %69 = vector.broadcast %cst_16 : f32 to vector<8x60xf32>
    %70 = arith.addf %69, %68 : vector<8x60xf32>
    %71 = arith.divf %69, %70 : vector<8x60xf32>
    %72 = vector.extract_strided_slice %65 {offsets = [0, 60], sizes = [8, 40], strides = [1, 1]} : vector<8x100xf32> to vector<8x40xf32>
    %73 = math.tanh %72 : vector<8x40xf32>
    %74 = vector.extract_strided_slice %71 {offsets = [0, 20], sizes = [8, 20], strides = [1, 1]} : vector<8x60xf32> to vector<8x20xf32>
    %75 = arith.mulf %74, %35 : vector<8x20xf32>
    %76 = vector.extract_strided_slice %71 {offsets = [0, 0], sizes = [8, 20], strides = [1, 1]} : vector<8x60xf32> to vector<8x20xf32>
    %77 = vector.extract_strided_slice %73 {offsets = [0, 0], sizes = [8, 20], strides = [1, 1]} : vector<8x40xf32> to vector<8x20xf32>
    %78 = arith.mulf %76, %77 : vector<8x20xf32>
    %79 = arith.addf %75, %78 : vector<8x20xf32>
    %80 = vector.extract_strided_slice %71 {offsets = [0, 40], sizes = [8, 20], strides = [1, 1]} : vector<8x60xf32> to vector<8x20xf32>
    %81 = math.tanh %79 : vector<8x20xf32>
    %82 = arith.mulf %80, %81 : vector<8x20xf32>
    %83 = vector.extract_strided_slice %73 {offsets = [0, 20], sizes = [8, 20], strides = [1, 1]} : vector<8x40xf32> to vector<8x20xf32>
    %84 = tpu.concatenate %82, %59, %83, %60 in 1 : vector<8x20xf32>, vector<8x20xf32>, vector<8x20xf32>, vector<8x20xf32> -> vector<8x80xf32>
    %cst_17 = arith.constant dense<0.000000e+00> : vector<8x100xf32>
    %85 = tpu.matmul %84, %4, %cst_17 {dimension_numbers = #tpu.dot_dimension_numbers<[1], [0], [0], [1], [0, 0, 1, 1], [], []>} : vector<8x80xf32>, vector<80x100xf32>, vector<8x100xf32> -> vector<8x100xf32>
    %86 = arith.addf %7, %85 : vector<8x100xf32>
    %87 = vector.extract_strided_slice %86 {offsets = [0, 0], sizes = [8, 60], strides = [1, 1]} : vector<8x100xf32> to vector<8x60xf32>
    %88 = arith.negf %87 : vector<8x60xf32>
    %89 = math.exp %88 : vector<8x60xf32>
    %cst_18 = arith.constant 1.000000e+00 : f32
    %90 = vector.broadcast %cst_18 : f32 to vector<8x60xf32>
    %91 = arith.addf %90, %89 : vector<8x60xf32>
    %92 = arith.divf %90, %91 : vector<8x60xf32>
    %93 = vector.extract_strided_slice %86 {offsets = [0, 60], sizes = [8, 40], strides = [1, 1]} : vector<8x100xf32> to vector<8x40xf32>
    %94 = math.tanh %93 : vector<8x40xf32>
    %95 = vector.extract_strided_slice %92 {offsets = [0, 20], sizes = [8, 20], strides = [1, 1]} : vector<8x60xf32> to vector<8x20xf32>
    %96 = arith.mulf %95, %56 : vector<8x20xf32>
    %97 = vector.extract_strided_slice %92 {offsets = [0, 0], sizes = [8, 20], strides = [1, 1]} : vector<8x60xf32> to vector<8x20xf32>
    %98 = vector.extract_strided_slice %94 {offsets = [0, 0], sizes = [8, 20], strides = [1, 1]} : vector<8x40xf32> to vector<8x20xf32>
    %99 = arith.mulf %97, %98 : vector<8x20xf32>
    %100 = arith.addf %96, %99 : vector<8x20xf32>
    %101 = vector.extract_strided_slice %92 {offsets = [0, 40], sizes = [8, 20], strides = [1, 1]} : vector<8x60xf32> to vector<8x20xf32>
    %102 = math.tanh %100 : vector<8x20xf32>
    %103 = arith.mulf %101, %102 : vector<8x20xf32>
    %104 = vector.extract_strided_slice %94 {offsets = [0, 20], sizes = [8, 20], strides = [1, 1]} : vector<8x40xf32> to vector<8x20xf32>
    %105 = vector.extract_strided_slice %15 {offsets = [2, 0, 0], sizes = [1, 8, 100], strides = [1, 1, 1]} : vector<8x8x100xf32> to vector<1x8x100xf32>
    %106 = vector.shape_cast %105 : vector<1x8x100xf32> to vector<8x100xf32>
    %107 = tpu.concatenate %82, %83 in 1 : vector<8x20xf32>, vector<8x20xf32> -> vector<8x40xf32>
    %cst_19 = arith.constant dense<0.000000e+00> : vector<8x100xf32>
    %108 = tpu.matmul %107, %3, %cst_19 {dimension_numbers = #tpu.dot_dimension_numbers<[1], [0], [0], [1], [0, 0, 1, 1], [], []>} : vector<8x40xf32>, vector<40x100xf32>, vector<8x100xf32> -> vector<8x100xf32>
    %109 = arith.addf %106, %108 : vector<8x100xf32>
    %110 = vector.extract_strided_slice %109 {offsets = [0, 0], sizes = [8, 60], strides = [1, 1]} : vector<8x100xf32> to vector<8x60xf32>
    %111 = arith.negf %110 : vector<8x60xf32>
    %112 = math.exp %111 : vector<8x60xf32>
    %cst_20 = arith.constant 1.000000e+00 : f32
    %113 = vector.broadcast %cst_20 : f32 to vector<8x60xf32>
    %114 = arith.addf %113, %112 : vector<8x60xf32>
    %115 = arith.divf %113, %114 : vector<8x60xf32>
    %116 = vector.extract_strided_slice %109 {offsets = [0, 60], sizes = [8, 40], strides = [1, 1]} : vector<8x100xf32> to vector<8x40xf32>
    %117 = math.tanh %116 : vector<8x40xf32>
    %118 = vector.extract_strided_slice %115 {offsets = [0, 20], sizes = [8, 20], strides = [1, 1]} : vector<8x60xf32> to vector<8x20xf32>
    %119 = arith.mulf %118, %79 : vector<8x20xf32>
    %120 = vector.extract_strided_slice %115 {offsets = [0, 0], sizes = [8, 20], strides = [1, 1]} : vector<8x60xf32> to vector<8x20xf32>
    %121 = vector.extract_strided_slice %117 {offsets = [0, 0], sizes = [8, 20], strides = [1, 1]} : vector<8x40xf32> to vector<8x20xf32>
    %122 = arith.mulf %120, %121 : vector<8x20xf32>
    %123 = arith.addf %119, %122 : vector<8x20xf32>
    %124 = vector.extract_strided_slice %115 {offsets = [0, 40], sizes = [8, 20], strides = [1, 1]} : vector<8x60xf32> to vector<8x20xf32>
    %125 = math.tanh %123 : vector<8x20xf32>
    %126 = arith.mulf %124, %125 : vector<8x20xf32>
    %127 = vector.extract_strided_slice %117 {offsets = [0, 20], sizes = [8, 20], strides = [1, 1]} : vector<8x40xf32> to vector<8x20xf32>
    %128 = tpu.concatenate %126, %103, %127, %104 in 1 : vector<8x20xf32>, vector<8x20xf32>, vector<8x20xf32>, vector<8x20xf32> -> vector<8x80xf32>
    %cst_21 = arith.constant dense<0.000000e+00> : vector<8x100xf32>
    %129 = tpu.matmul %128, %4, %cst_21 {dimension_numbers = #tpu.dot_dimension_numbers<[1], [0], [0], [1], [0, 0, 1, 1], [], []>} : vector<8x80xf32>, vector<80x100xf32>, vector<8x100xf32> -> vector<8x100xf32>
    %130 = arith.addf %7, %129 : vector<8x100xf32>
    %131 = vector.extract_strided_slice %130 {offsets = [0, 0], sizes = [8, 60], strides = [1, 1]} : vector<8x100xf32> to vector<8x60xf32>
    %132 = arith.negf %131 : vector<8x60xf32>
    %133 = math.exp %132 : vector<8x60xf32>
    %cst_22 = arith.constant 1.000000e+00 : f32
    %134 = vector.broadcast %cst_22 : f32 to vector<8x60xf32>
    %135 = arith.addf %134, %133 : vector<8x60xf32>
    %136 = arith.divf %134, %135 : vector<8x60xf32>
    %137 = vector.extract_strided_slice %130 {offsets = [0, 60], sizes = [8, 40], strides = [1, 1]} : vector<8x100xf32> to vector<8x40xf32>
    %138 = math.tanh %137 : vector<8x40xf32>
    %139 = vector.extract_strided_slice %136 {offsets = [0, 20], sizes = [8, 20], strides = [1, 1]} : vector<8x60xf32> to vector<8x20xf32>
    %140 = arith.mulf %139, %100 : vector<8x20xf32>
    %141 = vector.extract_strided_slice %136 {offsets = [0, 0], sizes = [8, 20], strides = [1, 1]} : vector<8x60xf32> to vector<8x20xf32>
    %142 = vector.extract_strided_slice %138 {offsets = [0, 0], sizes = [8, 20], strides = [1, 1]} : vector<8x40xf32> to vector<8x20xf32>
    %143 = arith.mulf %141, %142 : vector<8x20xf32>
    %144 = arith.addf %140, %143 : vector<8x20xf32>
    %145 = vector.extract_strided_slice %136 {offsets = [0, 40], sizes = [8, 20], strides = [1, 1]} : vector<8x60xf32> to vector<8x20xf32>
    %146 = math.tanh %144 : vector<8x20xf32>
    %147 = arith.mulf %145, %146 : vector<8x20xf32>
    %148 = vector.extract_strided_slice %138 {offsets = [0, 20], sizes = [8, 20], strides = [1, 1]} : vector<8x40xf32> to vector<8x20xf32>
    %149 = vector.extract_strided_slice %15 {offsets = [3, 0, 0], sizes = [1, 8, 100], strides = [1, 1, 1]} : vector<8x8x100xf32> to vector<1x8x100xf32>
    %150 = vector.shape_cast %149 : vector<1x8x100xf32> to vector<8x100xf32>
    %151 = tpu.concatenate %126, %127 in 1 : vector<8x20xf32>, vector<8x20xf32> -> vector<8x40xf32>
    %cst_23 = arith.constant dense<0.000000e+00> : vector<8x100xf32>
    %152 = tpu.matmul %151, %3, %cst_23 {dimension_numbers = #tpu.dot_dimension_numbers<[1], [0], [0], [1], [0, 0, 1, 1], [], []>} : vector<8x40xf32>, vector<40x100xf32>, vector<8x100xf32> -> vector<8x100xf32>
    %153 = arith.addf %150, %152 : vector<8x100xf32>
    %154 = vector.extract_strided_slice %153 {offsets = [0, 0], sizes = [8, 60], strides = [1, 1]} : vector<8x100xf32> to vector<8x60xf32>
    %155 = arith.negf %154 : vector<8x60xf32>
    %156 = math.exp %155 : vector<8x60xf32>
    %cst_24 = arith.constant 1.000000e+00 : f32
    %157 = vector.broadcast %cst_24 : f32 to vector<8x60xf32>
    %158 = arith.addf %157, %156 : vector<8x60xf32>
    %159 = arith.divf %157, %158 : vector<8x60xf32>
    %160 = vector.extract_strided_slice %153 {offsets = [0, 60], sizes = [8, 40], strides = [1, 1]} : vector<8x100xf32> to vector<8x40xf32>
    %161 = math.tanh %160 : vector<8x40xf32>
    %162 = vector.extract_strided_slice %159 {offsets = [0, 20], sizes = [8, 20], strides = [1, 1]} : vector<8x60xf32> to vector<8x20xf32>
    %163 = arith.mulf %162, %123 : vector<8x20xf32>
    %164 = vector.extract_strided_slice %159 {offsets = [0, 0], sizes = [8, 20], strides = [1, 1]} : vector<8x60xf32> to vector<8x20xf32>
    %165 = vector.extract_strided_slice %161 {offsets = [0, 0], sizes = [8, 20], strides = [1, 1]} : vector<8x40xf32> to vector<8x20xf32>
    %166 = arith.mulf %164, %165 : vector<8x20xf32>
    %167 = arith.addf %163, %166 : vector<8x20xf32>
    %168 = vector.extract_strided_slice %159 {offsets = [0, 40], sizes = [8, 20], strides = [1, 1]} : vector<8x60xf32> to vector<8x20xf32>
    %169 = math.tanh %167 : vector<8x20xf32>
    %170 = arith.mulf %168, %169 : vector<8x20xf32>
    %171 = vector.extract_strided_slice %161 {offsets = [0, 20], sizes = [8, 20], strides = [1, 1]} : vector<8x40xf32> to vector<8x20xf32>
    %172 = tpu.concatenate %170, %147, %171, %148 in 1 : vector<8x20xf32>, vector<8x20xf32>, vector<8x20xf32>, vector<8x20xf32> -> vector<8x80xf32>
    %cst_25 = arith.constant dense<0.000000e+00> : vector<8x100xf32>
    %173 = tpu.matmul %172, %4, %cst_25 {dimension_numbers = #tpu.dot_dimension_numbers<[1], [0], [0], [1], [0, 0, 1, 1], [], []>} : vector<8x80xf32>, vector<80x100xf32>, vector<8x100xf32> -> vector<8x100xf32>
    %174 = arith.addf %7, %173 : vector<8x100xf32>
    %175 = vector.extract_strided_slice %174 {offsets = [0, 0], sizes = [8, 60], strides = [1, 1]} : vector<8x100xf32> to vector<8x60xf32>
    %176 = arith.negf %175 : vector<8x60xf32>
    %177 = math.exp %176 : vector<8x60xf32>
    %cst_26 = arith.constant 1.000000e+00 : f32
    %178 = vector.broadcast %cst_26 : f32 to vector<8x60xf32>
    %179 = arith.addf %178, %177 : vector<8x60xf32>
    %180 = arith.divf %178, %179 : vector<8x60xf32>
    %181 = vector.extract_strided_slice %174 {offsets = [0, 60], sizes = [8, 40], strides = [1, 1]} : vector<8x100xf32> to vector<8x40xf32>
    %182 = math.tanh %181 : vector<8x40xf32>
    %183 = vector.extract_strided_slice %180 {offsets = [0, 20], sizes = [8, 20], strides = [1, 1]} : vector<8x60xf32> to vector<8x20xf32>
    %184 = arith.mulf %183, %144 : vector<8x20xf32>
    %185 = vector.extract_strided_slice %180 {offsets = [0, 0], sizes = [8, 20], strides = [1, 1]} : vector<8x60xf32> to vector<8x20xf32>
    %186 = vector.extract_strided_slice %182 {offsets = [0, 0], sizes = [8, 20], strides = [1, 1]} : vector<8x40xf32> to vector<8x20xf32>
    %187 = arith.mulf %185, %186 : vector<8x20xf32>
    %188 = arith.addf %184, %187 : vector<8x20xf32>
    %189 = vector.extract_strided_slice %180 {offsets = [0, 40], sizes = [8, 20], strides = [1, 1]} : vector<8x60xf32> to vector<8x20xf32>
    %190 = math.tanh %188 : vector<8x20xf32>
    %191 = arith.mulf %189, %190 : vector<8x20xf32>
    %192 = vector.extract_strided_slice %182 {offsets = [0, 20], sizes = [8, 20], strides = [1, 1]} : vector<8x40xf32> to vector<8x20xf32>
    %193 = vector.extract_strided_slice %15 {offsets = [4, 0, 0], sizes = [1, 8, 100], strides = [1, 1, 1]} : vector<8x8x100xf32> to vector<1x8x100xf32>
    %194 = vector.shape_cast %193 : vector<1x8x100xf32> to vector<8x100xf32>
    %195 = tpu.concatenate %170, %171 in 1 : vector<8x20xf32>, vector<8x20xf32> -> vector<8x40xf32>
    %cst_27 = arith.constant dense<0.000000e+00> : vector<8x100xf32>
    %196 = tpu.matmul %195, %3, %cst_27 {dimension_numbers = #tpu.dot_dimension_numbers<[1], [0], [0], [1], [0, 0, 1, 1], [], []>} : vector<8x40xf32>, vector<40x100xf32>, vector<8x100xf32> -> vector<8x100xf32>
    %197 = arith.addf %194, %196 : vector<8x100xf32>
    %198 = vector.extract_strided_slice %197 {offsets = [0, 0], sizes = [8, 60], strides = [1, 1]} : vector<8x100xf32> to vector<8x60xf32>
    %199 = arith.negf %198 : vector<8x60xf32>
    %200 = math.exp %199 : vector<8x60xf32>
    %cst_28 = arith.constant 1.000000e+00 : f32
    %201 = vector.broadcast %cst_28 : f32 to vector<8x60xf32>
    %202 = arith.addf %201, %200 : vector<8x60xf32>
    %203 = arith.divf %201, %202 : vector<8x60xf32>
    %204 = vector.extract_strided_slice %197 {offsets = [0, 60], sizes = [8, 40], strides = [1, 1]} : vector<8x100xf32> to vector<8x40xf32>
    %205 = math.tanh %204 : vector<8x40xf32>
    %206 = vector.extract_strided_slice %203 {offsets = [0, 20], sizes = [8, 20], strides = [1, 1]} : vector<8x60xf32> to vector<8x20xf32>
    %207 = arith.mulf %206, %167 : vector<8x20xf32>
    %208 = vector.extract_strided_slice %203 {offsets = [0, 0], sizes = [8, 20], strides = [1, 1]} : vector<8x60xf32> to vector<8x20xf32>
    %209 = vector.extract_strided_slice %205 {offsets = [0, 0], sizes = [8, 20], strides = [1, 1]} : vector<8x40xf32> to vector<8x20xf32>
    %210 = arith.mulf %208, %209 : vector<8x20xf32>
    %211 = arith.addf %207, %210 : vector<8x20xf32>
    %212 = vector.extract_strided_slice %203 {offsets = [0, 40], sizes = [8, 20], strides = [1, 1]} : vector<8x60xf32> to vector<8x20xf32>
    %213 = math.tanh %211 : vector<8x20xf32>
    %214 = arith.mulf %212, %213 : vector<8x20xf32>
    %215 = vector.extract_strided_slice %205 {offsets = [0, 20], sizes = [8, 20], strides = [1, 1]} : vector<8x40xf32> to vector<8x20xf32>
    %216 = tpu.concatenate %214, %191, %215, %192 in 1 : vector<8x20xf32>, vector<8x20xf32>, vector<8x20xf32>, vector<8x20xf32> -> vector<8x80xf32>
    %cst_29 = arith.constant dense<0.000000e+00> : vector<8x100xf32>
    %217 = tpu.matmul %216, %4, %cst_29 {dimension_numbers = #tpu.dot_dimension_numbers<[1], [0], [0], [1], [0, 0, 1, 1], [], []>} : vector<8x80xf32>, vector<80x100xf32>, vector<8x100xf32> -> vector<8x100xf32>
    %218 = arith.addf %7, %217 : vector<8x100xf32>
    %219 = vector.extract_strided_slice %218 {offsets = [0, 0], sizes = [8, 60], strides = [1, 1]} : vector<8x100xf32> to vector<8x60xf32>
    %220 = arith.negf %219 : vector<8x60xf32>
    %221 = math.exp %220 : vector<8x60xf32>
    %cst_30 = arith.constant 1.000000e+00 : f32
    %222 = vector.broadcast %cst_30 : f32 to vector<8x60xf32>
    %223 = arith.addf %222, %221 : vector<8x60xf32>
    %224 = arith.divf %222, %223 : vector<8x60xf32>
    %225 = vector.extract_strided_slice %218 {offsets = [0, 60], sizes = [8, 40], strides = [1, 1]} : vector<8x100xf32> to vector<8x40xf32>
    %226 = math.tanh %225 : vector<8x40xf32>
    %227 = vector.extract_strided_slice %224 {offsets = [0, 20], sizes = [8, 20], strides = [1, 1]} : vector<8x60xf32> to vector<8x20xf32>
    %228 = arith.mulf %227, %188 : vector<8x20xf32>
    %229 = vector.extract_strided_slice %224 {offsets = [0, 0], sizes = [8, 20], strides = [1, 1]} : vector<8x60xf32> to vector<8x20xf32>
    %230 = vector.extract_strided_slice %226 {offsets = [0, 0], sizes = [8, 20], strides = [1, 1]} : vector<8x40xf32> to vector<8x20xf32>
    %231 = arith.mulf %229, %230 : vector<8x20xf32>
    %232 = arith.addf %228, %231 : vector<8x20xf32>
    %233 = vector.extract_strided_slice %224 {offsets = [0, 40], sizes = [8, 20], strides = [1, 1]} : vector<8x60xf32> to vector<8x20xf32>
    %234 = math.tanh %232 : vector<8x20xf32>
    %235 = arith.mulf %233, %234 : vector<8x20xf32>
    %236 = vector.extract_strided_slice %226 {offsets = [0, 20], sizes = [8, 20], strides = [1, 1]} : vector<8x40xf32> to vector<8x20xf32>
    %237 = vector.extract_strided_slice %15 {offsets = [5, 0, 0], sizes = [1, 8, 100], strides = [1, 1, 1]} : vector<8x8x100xf32> to vector<1x8x100xf32>
    %238 = vector.shape_cast %237 : vector<1x8x100xf32> to vector<8x100xf32>
    %239 = tpu.concatenate %214, %215 in 1 : vector<8x20xf32>, vector<8x20xf32> -> vector<8x40xf32>
    %cst_31 = arith.constant dense<0.000000e+00> : vector<8x100xf32>
    %240 = tpu.matmul %239, %3, %cst_31 {dimension_numbers = #tpu.dot_dimension_numbers<[1], [0], [0], [1], [0, 0, 1, 1], [], []>} : vector<8x40xf32>, vector<40x100xf32>, vector<8x100xf32> -> vector<8x100xf32>
    %241 = arith.addf %238, %240 : vector<8x100xf32>
    %242 = vector.extract_strided_slice %241 {offsets = [0, 0], sizes = [8, 60], strides = [1, 1]} : vector<8x100xf32> to vector<8x60xf32>
    %243 = arith.negf %242 : vector<8x60xf32>
    %244 = math.exp %243 : vector<8x60xf32>
    %cst_32 = arith.constant 1.000000e+00 : f32
    %245 = vector.broadcast %cst_32 : f32 to vector<8x60xf32>
    %246 = arith.addf %245, %244 : vector<8x60xf32>
    %247 = arith.divf %245, %246 : vector<8x60xf32>
    %248 = vector.extract_strided_slice %241 {offsets = [0, 60], sizes = [8, 40], strides = [1, 1]} : vector<8x100xf32> to vector<8x40xf32>
    %249 = math.tanh %248 : vector<8x40xf32>
    %250 = vector.extract_strided_slice %247 {offsets = [0, 20], sizes = [8, 20], strides = [1, 1]} : vector<8x60xf32> to vector<8x20xf32>
    %251 = arith.mulf %250, %211 : vector<8x20xf32>
    %252 = vector.extract_strided_slice %247 {offsets = [0, 0], sizes = [8, 20], strides = [1, 1]} : vector<8x60xf32> to vector<8x20xf32>
    %253 = vector.extract_strided_slice %249 {offsets = [0, 0], sizes = [8, 20], strides = [1, 1]} : vector<8x40xf32> to vector<8x20xf32>
    %254 = arith.mulf %252, %253 : vector<8x20xf32>
    %255 = arith.addf %251, %254 : vector<8x20xf32>
    %256 = vector.extract_strided_slice %247 {offsets = [0, 40], sizes = [8, 20], strides = [1, 1]} : vector<8x60xf32> to vector<8x20xf32>
    %257 = math.tanh %255 : vector<8x20xf32>
    %258 = arith.mulf %256, %257 : vector<8x20xf32>
    %259 = vector.extract_strided_slice %249 {offsets = [0, 20], sizes = [8, 20], strides = [1, 1]} : vector<8x40xf32> to vector<8x20xf32>
    %260 = tpu.concatenate %258, %235, %259, %236 in 1 : vector<8x20xf32>, vector<8x20xf32>, vector<8x20xf32>, vector<8x20xf32> -> vector<8x80xf32>
    %cst_33 = arith.constant dense<0.000000e+00> : vector<8x100xf32>
    %261 = tpu.matmul %260, %4, %cst_33 {dimension_numbers = #tpu.dot_dimension_numbers<[1], [0], [0], [1], [0, 0, 1, 1], [], []>} : vector<8x80xf32>, vector<80x100xf32>, vector<8x100xf32> -> vector<8x100xf32>
    %262 = arith.addf %7, %261 : vector<8x100xf32>
    %263 = vector.extract_strided_slice %262 {offsets = [0, 0], sizes = [8, 60], strides = [1, 1]} : vector<8x100xf32> to vector<8x60xf32>
    %264 = arith.negf %263 : vector<8x60xf32>
    %265 = math.exp %264 : vector<8x60xf32>
    %cst_34 = arith.constant 1.000000e+00 : f32
    %266 = vector.broadcast %cst_34 : f32 to vector<8x60xf32>
    %267 = arith.addf %266, %265 : vector<8x60xf32>
    %268 = arith.divf %266, %267 : vector<8x60xf32>
    %269 = vector.extract_strided_slice %262 {offsets = [0, 60], sizes = [8, 40], strides = [1, 1]} : vector<8x100xf32> to vector<8x40xf32>
    %270 = math.tanh %269 : vector<8x40xf32>
    %271 = vector.extract_strided_slice %268 {offsets = [0, 20], sizes = [8, 20], strides = [1, 1]} : vector<8x60xf32> to vector<8x20xf32>
    %272 = arith.mulf %271, %232 : vector<8x20xf32>
    %273 = vector.extract_strided_slice %268 {offsets = [0, 0], sizes = [8, 20], strides = [1, 1]} : vector<8x60xf32> to vector<8x20xf32>
    %274 = vector.extract_strided_slice %270 {offsets = [0, 0], sizes = [8, 20], strides = [1, 1]} : vector<8x40xf32> to vector<8x20xf32>
    %275 = arith.mulf %273, %274 : vector<8x20xf32>
    %276 = arith.addf %272, %275 : vector<8x20xf32>
    %277 = vector.extract_strided_slice %268 {offsets = [0, 40], sizes = [8, 20], strides = [1, 1]} : vector<8x60xf32> to vector<8x20xf32>
    %278 = math.tanh %276 : vector<8x20xf32>
    %279 = arith.mulf %277, %278 : vector<8x20xf32>
    %280 = vector.extract_strided_slice %270 {offsets = [0, 20], sizes = [8, 20], strides = [1, 1]} : vector<8x40xf32> to vector<8x20xf32>
    %281 = vector.extract_strided_slice %15 {offsets = [6, 0, 0], sizes = [1, 8, 100], strides = [1, 1, 1]} : vector<8x8x100xf32> to vector<1x8x100xf32>
    %282 = vector.shape_cast %281 : vector<1x8x100xf32> to vector<8x100xf32>
    %283 = tpu.concatenate %258, %259 in 1 : vector<8x20xf32>, vector<8x20xf32> -> vector<8x40xf32>
    %cst_35 = arith.constant dense<0.000000e+00> : vector<8x100xf32>
    %284 = tpu.matmul %283, %3, %cst_35 {dimension_numbers = #tpu.dot_dimension_numbers<[1], [0], [0], [1], [0, 0, 1, 1], [], []>} : vector<8x40xf32>, vector<40x100xf32>, vector<8x100xf32> -> vector<8x100xf32>
    %285 = arith.addf %282, %284 : vector<8x100xf32>
    %286 = vector.extract_strided_slice %285 {offsets = [0, 0], sizes = [8, 60], strides = [1, 1]} : vector<8x100xf32> to vector<8x60xf32>
    %287 = arith.negf %286 : vector<8x60xf32>
    %288 = math.exp %287 : vector<8x60xf32>
    %cst_36 = arith.constant 1.000000e+00 : f32
    %289 = vector.broadcast %cst_36 : f32 to vector<8x60xf32>
    %290 = arith.addf %289, %288 : vector<8x60xf32>
    %291 = arith.divf %289, %290 : vector<8x60xf32>
    %292 = vector.extract_strided_slice %285 {offsets = [0, 60], sizes = [8, 40], strides = [1, 1]} : vector<8x100xf32> to vector<8x40xf32>
    %293 = math.tanh %292 : vector<8x40xf32>
    %294 = vector.extract_strided_slice %291 {offsets = [0, 20], sizes = [8, 20], strides = [1, 1]} : vector<8x60xf32> to vector<8x20xf32>
    %295 = arith.mulf %294, %255 : vector<8x20xf32>
    %296 = vector.extract_strided_slice %291 {offsets = [0, 0], sizes = [8, 20], strides = [1, 1]} : vector<8x60xf32> to vector<8x20xf32>
    %297 = vector.extract_strided_slice %293 {offsets = [0, 0], sizes = [8, 20], strides = [1, 1]} : vector<8x40xf32> to vector<8x20xf32>
    %298 = arith.mulf %296, %297 : vector<8x20xf32>
    %299 = arith.addf %295, %298 : vector<8x20xf32>
    %300 = vector.extract_strided_slice %291 {offsets = [0, 40], sizes = [8, 20], strides = [1, 1]} : vector<8x60xf32> to vector<8x20xf32>
    %301 = math.tanh %299 : vector<8x20xf32>
    %302 = arith.mulf %300, %301 : vector<8x20xf32>
    %303 = vector.extract_strided_slice %293 {offsets = [0, 20], sizes = [8, 20], strides = [1, 1]} : vector<8x40xf32> to vector<8x20xf32>
    %304 = tpu.concatenate %302, %279, %303, %280 in 1 : vector<8x20xf32>, vector<8x20xf32>, vector<8x20xf32>, vector<8x20xf32> -> vector<8x80xf32>
    %cst_37 = arith.constant dense<0.000000e+00> : vector<8x100xf32>
    %305 = tpu.matmul %304, %4, %cst_37 {dimension_numbers = #tpu.dot_dimension_numbers<[1], [0], [0], [1], [0, 0, 1, 1], [], []>} : vector<8x80xf32>, vector<80x100xf32>, vector<8x100xf32> -> vector<8x100xf32>
    %306 = arith.addf %7, %305 : vector<8x100xf32>
    %307 = vector.extract_strided_slice %306 {offsets = [0, 0], sizes = [8, 60], strides = [1, 1]} : vector<8x100xf32> to vector<8x60xf32>
    %308 = arith.negf %307 : vector<8x60xf32>
    %309 = math.exp %308 : vector<8x60xf32>
    %cst_38 = arith.constant 1.000000e+00 : f32
    %310 = vector.broadcast %cst_38 : f32 to vector<8x60xf32>
    %311 = arith.addf %310, %309 : vector<8x60xf32>
    %312 = arith.divf %310, %311 : vector<8x60xf32>
    %313 = vector.extract_strided_slice %306 {offsets = [0, 60], sizes = [8, 40], strides = [1, 1]} : vector<8x100xf32> to vector<8x40xf32>
    %314 = math.tanh %313 : vector<8x40xf32>
    %315 = vector.extract_strided_slice %312 {offsets = [0, 20], sizes = [8, 20], strides = [1, 1]} : vector<8x60xf32> to vector<8x20xf32>
    %316 = arith.mulf %315, %276 : vector<8x20xf32>
    %317 = vector.extract_strided_slice %312 {offsets = [0, 0], sizes = [8, 20], strides = [1, 1]} : vector<8x60xf32> to vector<8x20xf32>
    %318 = vector.extract_strided_slice %314 {offsets = [0, 0], sizes = [8, 20], strides = [1, 1]} : vector<8x40xf32> to vector<8x20xf32>
    %319 = arith.mulf %317, %318 : vector<8x20xf32>
    %320 = arith.addf %316, %319 : vector<8x20xf32>
    %321 = vector.extract_strided_slice %312 {offsets = [0, 40], sizes = [8, 20], strides = [1, 1]} : vector<8x60xf32> to vector<8x20xf32>
    %322 = math.tanh %320 : vector<8x20xf32>
    %323 = arith.mulf %321, %322 : vector<8x20xf32>
    %324 = vector.extract_strided_slice %314 {offsets = [0, 20], sizes = [8, 20], strides = [1, 1]} : vector<8x40xf32> to vector<8x20xf32>
    %325 = vector.extract_strided_slice %15 {offsets = [7, 0, 0], sizes = [1, 8, 100], strides = [1, 1, 1]} : vector<8x8x100xf32> to vector<1x8x100xf32>
    %326 = vector.shape_cast %325 : vector<1x8x100xf32> to vector<8x100xf32>
    %327 = tpu.concatenate %302, %303 in 1 : vector<8x20xf32>, vector<8x20xf32> -> vector<8x40xf32>
    %cst_39 = arith.constant dense<0.000000e+00> : vector<8x100xf32>
    %328 = tpu.matmul %327, %3, %cst_39 {dimension_numbers = #tpu.dot_dimension_numbers<[1], [0], [0], [1], [0, 0, 1, 1], [], []>} : vector<8x40xf32>, vector<40x100xf32>, vector<8x100xf32> -> vector<8x100xf32>
    %329 = arith.addf %326, %328 : vector<8x100xf32>
    %330 = vector.extract_strided_slice %329 {offsets = [0, 0], sizes = [8, 60], strides = [1, 1]} : vector<8x100xf32> to vector<8x60xf32>
    %331 = arith.negf %330 : vector<8x60xf32>
    %332 = math.exp %331 : vector<8x60xf32>
    %cst_40 = arith.constant 1.000000e+00 : f32
    %333 = vector.broadcast %cst_40 : f32 to vector<8x60xf32>
    %334 = arith.addf %333, %332 : vector<8x60xf32>
    %335 = arith.divf %333, %334 : vector<8x60xf32>
    %336 = vector.extract_strided_slice %329 {offsets = [0, 60], sizes = [8, 40], strides = [1, 1]} : vector<8x100xf32> to vector<8x40xf32>
    %337 = math.tanh %336 : vector<8x40xf32>
    %338 = vector.extract_strided_slice %335 {offsets = [0, 20], sizes = [8, 20], strides = [1, 1]} : vector<8x60xf32> to vector<8x20xf32>
    %339 = arith.mulf %338, %299 : vector<8x20xf32>
    %340 = vector.extract_strided_slice %335 {offsets = [0, 0], sizes = [8, 20], strides = [1, 1]} : vector<8x60xf32> to vector<8x20xf32>
    %341 = vector.extract_strided_slice %337 {offsets = [0, 0], sizes = [8, 20], strides = [1, 1]} : vector<8x40xf32> to vector<8x20xf32>
    %342 = arith.mulf %340, %341 : vector<8x20xf32>
    %343 = arith.addf %339, %342 : vector<8x20xf32>
    %344 = vector.extract_strided_slice %335 {offsets = [0, 40], sizes = [8, 20], strides = [1, 1]} : vector<8x60xf32> to vector<8x20xf32>
    %345 = math.tanh %343 : vector<8x20xf32>
    %346 = arith.mulf %344, %345 : vector<8x20xf32>
    %347 = vector.extract_strided_slice %337 {offsets = [0, 20], sizes = [8, 20], strides = [1, 1]} : vector<8x40xf32> to vector<8x20xf32>
    %348 = tpu.concatenate %346, %323, %347, %324 in 1 : vector<8x20xf32>, vector<8x20xf32>, vector<8x20xf32>, vector<8x20xf32> -> vector<8x80xf32>
    %cst_41 = arith.constant dense<0.000000e+00> : vector<8x100xf32>
    %349 = tpu.matmul %348, %4, %cst_41 {dimension_numbers = #tpu.dot_dimension_numbers<[1], [0], [0], [1], [0, 0, 1, 1], [], []>} : vector<8x80xf32>, vector<80x100xf32>, vector<8x100xf32> -> vector<8x100xf32>
    %350 = arith.addf %7, %349 : vector<8x100xf32>
    %351 = vector.extract_strided_slice %350 {offsets = [0, 0], sizes = [8, 60], strides = [1, 1]} : vector<8x100xf32> to vector<8x60xf32>
    %352 = arith.negf %351 : vector<8x60xf32>
    %353 = math.exp %352 : vector<8x60xf32>
    %cst_42 = arith.constant 1.000000e+00 : f32
    %354 = vector.broadcast %cst_42 : f32 to vector<8x60xf32>
    %355 = arith.addf %354, %353 : vector<8x60xf32>
    %356 = arith.divf %354, %355 : vector<8x60xf32>
    %357 = vector.extract_strided_slice %350 {offsets = [0, 60], sizes = [8, 40], strides = [1, 1]} : vector<8x100xf32> to vector<8x40xf32>
    %358 = math.tanh %357 : vector<8x40xf32>
    %359 = vector.extract_strided_slice %356 {offsets = [0, 20], sizes = [8, 20], strides = [1, 1]} : vector<8x60xf32> to vector<8x20xf32>
    %360 = arith.mulf %359, %320 : vector<8x20xf32>
    %361 = vector.extract_strided_slice %356 {offsets = [0, 0], sizes = [8, 20], strides = [1, 1]} : vector<8x60xf32> to vector<8x20xf32>
    %362 = vector.extract_strided_slice %358 {offsets = [0, 0], sizes = [8, 20], strides = [1, 1]} : vector<8x40xf32> to vector<8x20xf32>
    %363 = arith.mulf %361, %362 : vector<8x20xf32>
    %364 = arith.addf %360, %363 : vector<8x20xf32>
    %365 = vector.extract_strided_slice %356 {offsets = [0, 40], sizes = [8, 20], strides = [1, 1]} : vector<8x60xf32> to vector<8x20xf32>
    %366 = math.tanh %364 : vector<8x20xf32>
    %367 = arith.mulf %365, %366 : vector<8x20xf32>
    %368 = vector.extract_strided_slice %358 {offsets = [0, 20], sizes = [8, 20], strides = [1, 1]} : vector<8x40xf32> to vector<8x20xf32>
    %369 = tpu.concatenate %367, %368 in 1 : vector<8x20xf32>, vector<8x20xf32> -> vector<8x40xf32>
    %c0_43 = arith.constant 0 : index
    %c0_44 = arith.constant 0 : index
    %370 = vector.load %arg6[%c0_43, %c0_44] : memref<40x1xf32, #tpu.memory_space<vmem>>, vector<40x1xf32>
    %cst_45 = arith.constant dense<0.000000e+00> : vector<8x1xf32>
    %371 = tpu.matmul %369, %370, %cst_45 {dimension_numbers = #tpu.dot_dimension_numbers<[1], [0], [0], [1], [0, 0, 1, 1], [], []>} : vector<8x40xf32>, vector<40x1xf32>, vector<8x1xf32> -> vector<8x1xf32>
    %c0_46 = arith.constant 0 : index
    %c0_47 = arith.constant 0 : index
    %372 = vector.load %arg7[%c0_46, %c0_47] : memref<1x1xf32, #tpu.memory_space<vmem>>, vector<1x1xf32>
    %373 = vector.broadcast %372 : vector<1x1xf32> to vector<8x1xf32>
    %374 = arith.addf %371, %373 : vector<8x1xf32>
    %cst_48 = arith.constant 0.000000e+00 : f32
    %375 = vector.broadcast %cst_48 : f32 to vector<8x1xf32>
    %376 = arith.maximumf %374, %375 : vector<8x1xf32>
    %c0_49 = arith.constant 0 : index
    %c0_50 = arith.constant 0 : index
    %377 = vector.load %arg8[%c0_49, %c0_50] : memref<8x1xf32, #tpu.memory_space<vmem>>, vector<8x1xf32>
    tpu.vector_store %arg8[%c0_49, %c0_50], %376 {strides = array<i32>} : memref<8x1xf32, #tpu.memory_space<vmem>>, vector<8x1xf32>,
    return
  }
}

</mosaic_0001>

<llo_original>
// kernel: ensemble_forward.1
$region0: #{ensemble_forward.1}
  #allocation0 [shape = 'u32[]', space=smem, size = 0x4, offset = 0x4, fixed_abs, tag = 'smem constant byte address 0x4 - core index']
  #allocation1 [shape = 'u32[144,128]{1,0:T(1,128)}', space=vmem, size = 0x12000, scoped, tag = 'internal scratch']
  #allocation2 [shape = 'f32[1,1]{1,0:T(1,128)S(1)}', space=vmem, size = 0x200, scoped, tag = 'scoped memory for ensemble_forward.1']
  %s0 = inlined_call_operand.vmem [shape: f32[8,8], index: 0, kind: input, shape index: {}]
  %s1 = inlined_call_operand.vmem [shape: f32[1,100], index: 1, kind: input, shape index: {}]
  %s2 = inlined_call_operand.vmem [shape: f32[1,100], index: 2, kind: input, shape index: {}]
  %s3 = inlined_call_operand.hbm [shape: f32[40,100], index: 3, kind: input, shape index: {}]
  %s4 = inlined_call_operand.vmem [shape: f32[80,100], index: 4, kind: input, shape index: {}]
  %s5 = inlined_call_operand.vmem [shape: f32[1,100], index: 5, kind: input, shape index: {}]
  %s6 = inlined_call_operand.vmem [shape: f32[40,1], index: 6, kind: input, shape index: {}]
  %s7 = inlined_call_operand.<no memory space> [shape: f32[1,1], index: 7, kind: input, shape index: {}]
  %s8 = inlined_call_operand.vmem [shape: f32[8,1], index: 8, kind: output, shape index: {}]
  %s9 = sld [smem:[#allocation0]]
  $region46: #{ensemble_forward.1} parent=0
    _
  %s11 = ssub.s32 1, %s9
  %s12 = scalar_select 0, %s11, %s9
  %v13 = vstv %s7
  %14 = vst [vmem:[#allocation2] sm:$0x1] %v13
  $region1: #{ensemble_forward.1} parent=0
    #allocation3 [shape = 'u8[20480]{0}', space=vmem, size = 0x5000, scoped, tag = 'input window, operand 3, single buffered']
    #allocation4 [shape = 's32[1]{0}', space=sflag, size = 0x4, scoped, tag = 'scoped memory for ensemble_forward.1']
    %15 = vsyncpa [#allocation4], 0
    // Predicated region
    $region2: #{ensemble_forward.1} parent=1 // pred_check
      _
    $region3: #{ensemble_forward.1} parent=1 // pred_check_branch
      %17 = sbr.rel (0) target = $region5
    $region4: #{ensemble_forward.1} parent=1 // pred_region
      _
    $region5: #{ensemble_forward.1} parent=1 // pred_fallthru
      _
    // Predicated region
    $region6: #{ensemble_forward.1} parent=1 // pred_check
      _
    $region7: #{ensemble_forward.1} parent=1 // pred_check_branch
      %19 = sbr.rel (0) target = $region9
    $region8: #{ensemble_forward.1} parent=1 // pred_region
      _
    $region9: #{ensemble_forward.1} parent=1 // pred_fallthru
      _
    // Predicated region
    $region10: #{ensemble_forward.1} parent=1 // pred_check
      _
    $region11: #{ensemble_forward.1} parent=1 // pred_check_branch
      %21 = sbr.rel (0) target = $region13
    $region12: #{ensemble_forward.1} parent=1 // pred_region
      _
    $region13: #{ensemble_forward.1} parent=1 // pred_fallthru
      _
    // Predicated region
    $region14: #{ensemble_forward.1} parent=1 // pred_check
      _
    $region15: #{ensemble_forward.1} parent=1 // pred_check_branch
      %23 = sbr.rel (0) target = $region17
    $region16: #{ensemble_forward.1} parent=1 // pred_region
      %s25 = ssub.s32 640, 640
      %26 = vsyncadd [#allocation4], %s25
      %s27 = sshll.u32 [#allocation3], 4
      %s28 = int_to_ptr.vmem [resolvable:$true] %s27
      %33 = dma.hbm_to_vmem [thread:$0]  %s3, 640, %s28, [#allocation4], 128, 128, 8
    $region17: #{ensemble_forward.1} parent=1 // pred_fallthru
      _
    // Predicated region
    $region18: #{ensemble_forward.1} parent=1 // pred_check
      _
    $region19: #{ensemble_forward.1} parent=1 // pred_check_branch
      %35 = sbr.rel (0) target = $region21
    $region20: #{ensemble_forward.1} parent=1 // pred_region
      _
    $region21: #{ensemble_forward.1} parent=1 // pred_fallthru
      _
    // Predicated region
    $region22: #{ensemble_forward.1} parent=1 // pred_check
      _
    $region23: #{ensemble_forward.1} parent=1 // pred_check_branch
      %37 = sbr.rel (0) target = $region25
    $region24: #{ensemble_forward.1} parent=1 // pred_region
      _
    $region25: #{ensemble_forward.1} parent=1 // pred_fallthru
      _
    // Predicated region
    $region26: #{ensemble_forward.1} parent=1 // pred_check
      _
    $region27: #{ensemble_forward.1} parent=1 // pred_check_branch
      %39 = sbr.rel (0) target = $region29
    $region28: #{ensemble_forward.1} parent=1 // pred_region
      _
    $region29: #{ensemble_forward.1} parent=1 // pred_fallthru
      _
    // Predicated region
    $region30: #{ensemble_forward.1} parent=1 // pred_check
      _
    $region31: #{ensemble_forward.1} parent=1 // pred_check_branch
      %41 = sbr.rel (0) target = $region33
    $region32: #{ensemble_forward.1} parent=1 // pred_region
      _
    $region33: #{ensemble_forward.1} parent=1 // pred_fallthru
      _
    // Predicated region
    $region34: #{ensemble_forward.1} parent=1 // pred_check
      _
    $region35: #{ensemble_forward.1} parent=1 // pred_check_branch
      %43 = sbr.rel (0) target = $region37
    $region36: #{ensemble_forward.1} parent=1 // pred_region
      %44 = dma.done [#allocation4], 640
    $region37: #{ensemble_forward.1} parent=1 // pred_fallthru
      _
    %v45 = vld [vmem:[%s0] sm:$0xff]
    %v46 = vld [vmem:[%s1] sm:$0x1]
    %v47 = vld [vmem:[%s2] sm:$0x1]
    %v48 = vld [vmem:[#allocation3] sm:$0xff]
    %v49 = vld [vmem:[#allocation3 + $0x8] sm:$0xff]
    %v50 = vld [vmem:[#allocation3 + $0x10] sm:$0xff]
    %v51 = vld [vmem:[#allocation3 + $0x18] sm:$0xff]
    %v52 = vld [vmem:[#allocation3 + $0x20] sm:$0xff]
    %v53 = vld [vmem:[%s4] sm:$0xff]
    %v54 = vld [vmem:[%s4 + $0x8] sm:$0xff]
    %v55 = vld [vmem:[%s4 + $0x10] sm:$0xff]
    %v56 = vld [vmem:[%s4 + $0x18] sm:$0xff]
    %v57 = vld [vmem:[%s4 + $0x20] sm:$0xff]
    %v58 = vld [vmem:[%s4 + $0x28] sm:$0xff]
    %v59 = vld [vmem:[%s4 + $0x30] sm:$0xff]
    %v60 = vld [vmem:[%s4 + $0x38] sm:$0xff]
    %v61 = vld [vmem:[%s4 + $0x40] sm:$0xff]
    %v62 = vld [vmem:[%s4 + $0x48] sm:$0xff]
    %v63 = vld [vmem:[%s5] sm:$0x1]
    %v65 = vlaneseq
    %v66 = vshrl.u32 %v65, 7
    %v67 = vsub.s32 0, %v66
    %v68 = vrot.slane %v63, %v67
    %v70 = vlaneseq
    %v71 = vshrl.u32 %v70, 7
    %v72 = vsub.s32 0, %v71
    %v73 = vrot.slane %v45, %v72
    %75 = vbcast.lane.b32.xlu0 %v73, 256
    %v76 = vpop.permute.xlu0 %75
    %v77 = vlaneseq
    %v78 = vshrl.u32 %v77, 7
    %v79 = vsub.s32 1, %v78
    %v80 = vrot.slane %v45, %v79
    %82 = vbcast.lane.b32.xlu0 %v80, 256
    %v83 = vpop.permute.xlu0 %82
    %v84 = vlaneseq
    %v85 = vshrl.u32 %v84, 7
    %v86 = vsub.s32 2, %v85
    %v87 = vrot.slane %v45, %v86
    %89 = vbcast.lane.b32.xlu0 %v87, 256
    %v90 = vpop.permute.xlu0 %89
    %v91 = vlaneseq
    %v92 = vshrl.u32 %v91, 7
    %v93 = vsub.s32 3, %v92
    %v94 = vrot.slane %v45, %v93
    %96 = vbcast.lane.b32.xlu0 %v94, 256
    %v97 = vpop.permute.xlu0 %96
    %v98 = vlaneseq
    %v99 = vshrl.u32 %v98, 7
    %v100 = vsub.s32 4, %v99
    %v101 = vrot.slane %v45, %v100
    %103 = vbcast.lane.b32.xlu0 %v101, 256
    %v104 = vpop.permute.xlu0 %103
    %v105 = vlaneseq
    %v106 = vshrl.u32 %v105, 7
    %v107 = vsub.s32 5, %v106
    %v108 = vrot.slane %v45, %v107
    %110 = vbcast.lane.b32.xlu0 %v108, 256
    %v111 = vpop.permute.xlu0 %110
    %v112 = vlaneseq
    %v113 = vshrl.u32 %v112, 7
    %v114 = vsub.s32 6, %v113
    %v115 = vrot.slane %v45, %v114
    %117 = vbcast.lane.b32.xlu0 %v115, 256
    %v118 = vpop.permute.xlu0 %117
    %v119 = vlaneseq
    %v120 = vshrl.u32 %v119, 7
    %v121 = vsub.s32 7, %v120
    %v122 = vrot.slane %v45, %v121
    %124 = vbcast.lane.b32.xlu0 %v122, 256
    %v125 = vpop.permute.xlu0 %124
    %v127 = vlaneseq
    %v128 = vshrl.u32 %v127, 7
    %v129 = vsub.s32 0, %v128
    %v130 = vrot.slane %v46, %v129
    %v132 = vmul.f32 %v76, %v130
    %v133 = vmul.f32 %v83, %v130
    %v134 = vmul.f32 %v90, %v130
    %v135 = vmul.f32 %v97, %v130
    %v136 = vmul.f32 %v104, %v130
    %v137 = vmul.f32 %v111, %v130
    %v138 = vmul.f32 %v118, %v130
    %v139 = vmul.f32 %v125, %v130
    %v141 = vlaneseq
    %v142 = vshrl.u32 %v141, 7
    %v143 = vsub.s32 0, %v142
    %v144 = vrot.slane %v47, %v143
    %v146 = vadd.f32 %v132, %v144
    %v147 = vadd.f32 %v133, %v144
    %v148 = vadd.f32 %v134, %v144
    %v149 = vadd.f32 %v135, %v144
    %v150 = vadd.f32 %v136, %v144
    %v151 = vadd.f32 %v137, %v144
    %v152 = vadd.f32 %v138, %v144
    %v153 = vadd.f32 %v139, %v144
    %vm154 = vcmask 326656
    %v156 = vsel %vm154, 0.0, 0
    %158 = vmatprep.subr.mxu0 0.0
    %159 = vmatpush1.msra.mxu0 %v48
    %160 = vmatprep.subr.mxu0 0.0
    %161 = vmatpush1.msra.mxu0 %v49
    %162 = vmatprep.subr.mxu0 0.0
    %163 = vmatpush1.msra.mxu0 %v50
    %164 = vmatprep.subr.mxu0 0.0
    %165 = vmatpush1.msra.mxu0 %v51
    %166 = vmatprep.subr.mxu0 0.0
    %167 = vmatpush1.msra.mxu0 %v52
    %168 = vmatprep.subr.mxu0 0.0
    %169 = vmatpush1.msra.mxu0 0.0
    %170 = vmatprep.subr.mxu0 0.0
    %171 = vmatpush1.msra.mxu0 0.0
    %172 = vmatprep.subr.mxu0 0.0
    %173 = vmatpush1.msra.mxu0 0.0
    %174 = vmatprep.subr.mxu0 0.0
    %175 = vmatpush1.msra.mxu0 0.0
    %176 = vmatprep.subr.mxu0 0.0
    %177 = vmatpush1.msra.mxu0 0.0
    %178 = vmatprep.subr.mxu0 0.0
    %179 = vmatpush1.msra.mxu0 0.0
    %180 = vmatprep.subr.mxu0 0.0
    %181 = vmatpush1.msra.mxu0 0.0
    %182 = vmatprep.subr.mxu0 0.0
    %183 = vmatpush1.msra.mxu0 0.0
    %184 = vmatprep.subr.mxu0 0.0
    %185 = vmatpush1.msra.mxu0 0.0
    %186 = vmatprep.subr.mxu0 0.0
    %187 = vmatpush1.msra.mxu0 0.0
    %188 = vmatprep.subr.mxu0 0.0
    %189 = vmatpush1.msra.mxu0 0.0
    %190 = vmatprep.subr.mxu0 0.0
    %191 = vmatpush1.msra.mxu0 0.0
    %192 = vmatprep.subr.mxu0 0.0
    %193 = vmatpush1.msra.mxu0 0.0
    %194 = vmatprep.subr.mxu0 0.0
    %195 = vmatpush1.msra.mxu0 0.0
    %196 = vmatprep.subr.mxu0 0.0
    %197 = vmatpush1.msra.mxu0 0.0
    %198 = vmatprep.subr.mxu0 0.0
    %199 = vmatpush1.msra.mxu0 0.0
    %200 = vmatprep.subr.mxu0 0.0
    %201 = vmatpush1.msra.mxu0 0.0
    %202 = vmatprep.subr.mxu0 0.0
    %203 = vmatpush1.msra.mxu0 0.0
    %204 = vmatprep.subr.mxu0 0.0
    %205 = vmatpush1.msra.mxu0 0.0
    %206 = vmatprep.subr.mxu0 0.0
    %207 = vmatpush1.msra.mxu0 0.0
    %208 = vmatprep.subr.mxu0 0.0
    %209 = vmatpush1.msra.mxu0 0.0
    %210 = vmatprep.subr.mxu0 0.0
    %211 = vmatpush1.msra.mxu0 0.0
    %212 = vmatprep.subr.mxu0 0.0
    %213 = vmatpush1.msra.mxu0 0.0
    %214 = vmatprep.subr.mxu0 0.0
    %215 = vmatpush1.msra.mxu0 0.0
    %216 = vmatprep.subr.mxu0 0.0
    %217 = vmatpush1.msra.mxu0 0.0
    %218 = vmatprep.subr.mxu0 0.0
    %219 = vmatpush1.msra.mxu0 0.0
    %220 = vmatprep.subr.mxu0 0.0
    %221 = vmatpush1.msra.mxu0 0.0
    %222 = vmatprep.mubr.f32.mxu0 0.0
    %223 = vmatmul.mubr.f32.gmra.mrb[0].mxu0 %v156
    %v224 = vpop.f32.mrb[0].mxu0
    %v225 = vadd.f32 0.0, %v224
    %v226 = vpop.f32.mrb[0].mxu0
    %227 = vdwg.mxu0
    %v228 = vadd.f32 %v146, %v225
    %v229 = vxor.u32 %v228, 2147483648
    %v230 = vmul.f32 %v229, 1.442695
    %v231 = vpow.pop %v230
    %v232 = vadd.f32 %v231, 1.0
    %v233 = vrcp.pop %v232
    %v234 = vmul.f32 1.0, %v233
    %v235 = vtanh.pop %v228
    %v236 = vmul.f32 %v234, 0.0
    %238 = vrot.lane.b32.xlu0 %v235, 68
    %v239 = vpop.permute.xlu0 %238
    %v241 = vmul.f32 %v234, %v239
    %243 = vrot.lane.b32.xlu0 %v241, 20
    %v244 = vpop.permute.xlu0 %243
    %v246 = vadd.f32 %v236, %v244
    %v247 = vtanh.pop %v246
    %249 = vrot.lane.b32.xlu0 %v247, 20
    %v250 = vpop.permute.xlu0 %249
    %v252 = vmul.f32 %v234, %v250
    %254 = vrot.lane.b32.xlu0 %v252, 88
    %v255 = vpop.permute.xlu0 %254
    %257 = vrot.lane.b32.xlu0 %v235, 88
    %v258 = vpop.permute.xlu0 %257
    %vm260 = vcmask 162816
    %v261 = vsel %vm260, %v255, 0.0
    %v262 = vsel %vm154, %v261, %v258
    %vm263 = vcmask 490496
    %v264 = vsel %vm263, %v262, 0.0
    %vm265 = vcmask 654336
    %v267 = vsel %vm265, %v264, 0
    %269 = vmatprep.subr.mxu0 0.0
    %270 = vmatpush1.msra.mxu0 %v53
    %271 = vmatprep.subr.mxu0 0.0
    %272 = vmatpush1.msra.mxu0 %v54
    %273 = vmatprep.subr.mxu0 0.0
    %274 = vmatpush1.msra.mxu0 %v55
    %275 = vmatprep.subr.mxu0 0.0
    %276 = vmatpush1.msra.mxu0 %v56
    %277 = vmatprep.subr.mxu0 0.0
    %278 = vmatpush1.msra.mxu0 %v57
    %279 = vmatprep.subr.mxu0 0.0
    %280 = vmatpush1.msra.mxu0 %v58
    %281 = vmatprep.subr.mxu0 0.0
    %282 = vmatpush1.msra.mxu0 %v59
    %283 = vmatprep.subr.mxu0 0.0
    %284 = vmatpush1.msra.mxu0 %v60
    %285 = vmatprep.subr.mxu0 0.0
    %286 = vmatpush1.msra.mxu0 %v61
    %287 = vmatprep.subr.mxu0 0.0
    %288 = vmatpush1.msra.mxu0 %v62
    %289 = vmatprep.subr.mxu0 0.0
    %290 = vmatpush1.msra.mxu0 0.0
    %291 = vmatprep.subr.mxu0 0.0
    %292 = vmatpush1.msra.mxu0 0.0
    %293 = vmatprep.subr.mxu0 0.0
    %294 = vmatpush1.msra.mxu0 0.0
    %295 = vmatprep.subr.mxu0 0.0
    %296 = vmatpush1.msra.mxu0 0.0
    %297 = vmatprep.subr.mxu0 0.0
    %298 = vmatpush1.msra.mxu0 0.0
    %299 = vmatprep.subr.mxu0 0.0
    %300 = vmatpush1.msra.mxu0 0.0
    %301 = vmatprep.subr.mxu0 0.0
    %302 = vmatpush1.msra.mxu0 0.0
    %303 = vmatprep.subr.mxu0 0.0
    %304 = vmatpush1.msra.mxu0 0.0
    %305 = vmatprep.subr.mxu0 0.0
    %306 = vmatpush1.msra.mxu0 0.0
    %307 = vmatprep.subr.mxu0 0.0
    %308 = vmatpush1.msra.mxu0 0.0
    %309 = vmatprep.subr.mxu0 0.0
    %310 = vmatpush1.msra.mxu0 0.0
    %311 = vmatprep.subr.mxu0 0.0
    %312 = vmatpush1.msra.mxu0 0.0
    %313 = vmatprep.subr.mxu0 0.0
    %314 = vmatpush1.msra.mxu0 0.0
    %315 = vmatprep.subr.mxu0 0.0
    %316 = vmatpush1.msra.mxu0 0.0
    %317 = vmatprep.subr.mxu0 0.0
    %318 = vmatpush1.msra.mxu0 0.0
    %319 = vmatprep.subr.mxu0 0.0
    %320 = vmatpush1.msra.mxu0 0.0
    %321 = vmatprep.subr.mxu0 0.0
    %322 = vmatpush1.msra.mxu0 0.0
    %323 = vmatprep.subr.mxu0 0.0
    %324 = vmatpush1.msra.mxu0 0.0
    %325 = vmatprep.subr.mxu0 0.0
    %326 = vmatpush1.msra.mxu0 0.0
    %327 = vmatprep.subr.mxu0 0.0
    %328 = vmatpush1.msra.mxu0 0.0
    %329 = vmatprep.subr.mxu0 0.0
    %330 = vmatpush1.msra.mxu0 0.0
    %331 = vmatprep.subr.mxu0 0.0
    %332 = vmatpush1.msra.mxu0 0.0
    %333 = vmatprep.mubr.f32.mxu0 0.0
    %334 = vmatmul.mubr.f32.gmra.mrb[0].mxu0 %v267
    %v335 = vpop.f32.mrb[0].mxu0
    %v336 = vadd.f32 0.0, %v335
    %v337 = vpop.f32.mrb[0].mxu0
    %338 = vdwg.mxu0
    %v339 = vadd.f32 %v68, %v336
    %v340 = vxor.u32 %v339, 2147483648
    %v341 = vmul.f32 %v340, 1.442695
    %v342 = vpow.pop %v341
    %v343 = vadd.f32 %v342, 1.0
    %v344 = vrcp.pop %v343
    %v345 = vmul.f32 1.0, %v344
    %v346 = vtanh.pop %v339
    %v347 = vmul.f32 %v345, 0.0
    %349 = vrot.lane.b32.xlu0 %v346, 68
    %v350 = vpop.permute.xlu0 %349
    %v352 = vmul.f32 %v345, %v350
    %354 = vrot.lane.b32.xlu0 %v352, 20
    %v355 = vpop.permute.xlu0 %354
    %v357 = vadd.f32 %v347, %v355
    %v358 = vtanh.pop %v357
    %360 = vrot.lane.b32.xlu0 %v358, 20
    %v361 = vpop.permute.xlu0 %360
    %v363 = vmul.f32 %v345, %v361
    %v364 = vsel %vm260, %v255, %v239
    %v366 = vsel %vm154, %v364, 0
    %368 = vmatprep.subr.mxu0 0.0
    %369 = vmatpush1.msra.mxu0 %v48
    %370 = vmatprep.subr.mxu0 0.0
    %371 = vmatpush1.msra.mxu0 %v49
    %372 = vmatprep.subr.mxu0 0.0
    %373 = vmatpush1.msra.mxu0 %v50
    %374 = vmatprep.subr.mxu0 0.0
    %375 = vmatpush1.msra.mxu0 %v51
    %376 = vmatprep.subr.mxu0 0.0
    %377 = vmatpush1.msra.mxu0 %v52
    %378 = vmatprep.subr.mxu0 0.0
    %379 = vmatpush1.msra.mxu0 0.0
    %380 = vmatprep.subr.mxu0 0.0
    %381 = vmatpush1.msra.mxu0 0.0
    %382 = vmatprep.subr.mxu0 0.0
    %383 = vmatpush1.msra.mxu0 0.0
    %384 = vmatprep.subr.mxu0 0.0
    %385 = vmatpush1.msra.mxu0 0.0
    %386 = vmatprep.subr.mxu0 0.0
    %387 = vmatpush1.msra.mxu0 0.0
    %388 = vmatprep.subr.mxu0 0.0
    %389 = vmatpush1.msra.mxu0 0.0
    %390 = vmatprep.subr.mxu0 0.0
    %391 = vmatpush1.msra.mxu0 0.0
    %392 = vmatprep.subr.mxu0 0.0
    %393 = vmatpush1.msra.mxu0 0.0
    %394 = vmatprep.subr.mxu0 0.0
    %395 = vmatpush1.msra.mxu0 0.0
    %396 = vmatprep.subr.mxu0 0.0
    %397 = vmatpush1.msra.mxu0 0.0
    %398 = vmatprep.subr.mxu0 0.0
    %399 = vmatpush1.msra.mxu0 0.0
    %400 = vmatprep.subr.mxu0 0.0
    %401 = vmatpush1.msra.mxu0 0.0
    %402 = vmatprep.subr.mxu0 0.0
    %403 = vmatpush1.msra.mxu0 0.0
    %404 = vmatprep.subr.mxu0 0.0
    %405 = vmatpush1.msra.mxu0 0.0
    %406 = vmatprep.subr.mxu0 0.0
    %407 = vmatpush1.msra.mxu0 0.0
    %408 = vmatprep.subr.mxu0 0.0
    %409 = vmatpush1.msra.mxu0 0.0
    %410 = vmatprep.subr.mxu0 0.0
    %411 = vmatpush1.msra.mxu0 0.0
    %412 = vmatprep.subr.mxu0 0.0
    %413 = vmatpush1.msra.mxu0 0.0
    %414 = vmatprep.subr.mxu0 0.0
    %415 = vmatpush1.msra.mxu0 0.0
    %416 = vmatprep.subr.mxu0 0.0
    %417 = vmatpush1.msra.mxu0 0.0
    %418 = vmatprep.subr.mxu0 0.0
    %419 = vmatpush1.msra.mxu0 0.0
    %420 = vmatprep.subr.mxu0 0.0
    %421 = vmatpush1.msra.mxu0 0.0
    %422 = vmatprep.subr.mxu0 0.0
    %423 = vmatpush1.msra.mxu0 0.0
    %424 = vmatprep.subr.mxu0 0.0
    %425 = vmatpush1.msra.mxu0 0.0
    %426 = vmatprep.subr.mxu0 0.0
    %427 = vmatpush1.msra.mxu0 0.0
    %428 = vmatprep.subr.mxu0 0.0
    %429 = vmatpush1.msra.mxu0 0.0
    %430 = vmatprep.subr.mxu0 0.0
    %431 = vmatpush1.msra.mxu0 0.0
    %432 = vmatprep.mubr.f32.mxu0 0.0
    %433 = vmatmul.mubr.f32.gmra.mrb[0].mxu0 %v366
    %v434 = vpop.f32.mrb[0].mxu0
    %v435 = vadd.f32 0.0, %v434
    %v436 = vpop.f32.mrb[0].mxu0
    %437 = vdwg.mxu0
    %v438 = vadd.f32 %v147, %v435
    %v439 = vxor.u32 %v438, 2147483648
    %v440 = vmul.f32 %v439, 1.442695
    %v441 = vpow.pop %v440
    %v442 = vadd.f32 %v441, 1.0
    %v443 = vrcp.pop %v442
    %v444 = vmul.f32 1.0, %v443
    %v445 = vtanh.pop %v438
    %v446 = vmul.f32 %v444, %v246
    %448 = vrot.lane.b32.xlu0 %v445, 68
    %v449 = vpop.permute.xlu0 %448
    %v451 = vmul.f32 %v444, %v449
    %453 = vrot.lane.b32.xlu0 %v451, 20
    %v454 = vpop.permute.xlu0 %453
    %v456 = vadd.f32 %v446, %v454
    %v457 = vtanh.pop %v456
    %459 = vrot.lane.b32.xlu0 %v457, 20
    %v460 = vpop.permute.xlu0 %459
    %v462 = vmul.f32 %v444, %v460
    %464 = vrot.lane.b32.xlu0 %v462, 88
    %v465 = vpop.permute.xlu0 %464
    %468 = vrot.lane.b32.xlu0 %v363, 108
    %v469 = vpop.permute.xlu0 %468
    %471 = vrot.lane.b32.xlu0 %v445, 88
    %v472 = vpop.permute.xlu0 %471
    %474 = vrot.lane.b32.xlu0 %v346, 108
    %v475 = vpop.permute.xlu0 %474
    %v477 = vsel %vm260, %v465, %v469
    %v478 = vsel %vm154, %v477, %v472
    %v479 = vsel %vm263, %v478, %v475
    %v481 = vsel %vm265, %v479, 0
    %483 = vmatprep.subr.mxu0 0.0
    %484 = vmatpush1.msra.mxu0 %v53
    %485 = vmatprep.subr.mxu0 0.0
    %486 = vmatpush1.msra.mxu0 %v54
    %487 = vmatprep.subr.mxu0 0.0
    %488 = vmatpush1.msra.mxu0 %v55
    %489 = vmatprep.subr.mxu0 0.0
    %490 = vmatpush1.msra.mxu0 %v56
    %491 = vmatprep.subr.mxu0 0.0
    %492 = vmatpush1.msra.mxu0 %v57
    %493 = vmatprep.subr.mxu0 0.0
    %494 = vmatpush1.msra.mxu0 %v58
    %495 = vmatprep.subr.mxu0 0.0
    %496 = vmatpush1.msra.mxu0 %v59
    %497 = vmatprep.subr.mxu0 0.0
    %498 = vmatpush1.msra.mxu0 %v60
    %499 = vmatprep.subr.mxu0 0.0
    %500 = vmatpush1.msra.mxu0 %v61
    %501 = vmatprep.subr.mxu0 0.0
    %502 = vmatpush1.msra.mxu0 %v62
    %503 = vmatprep.subr.mxu0 0.0
    %504 = vmatpush1.msra.mxu0 0.0
    %505 = vmatprep.subr.mxu0 0.0
    %506 = vmatpush1.msra.mxu0 0.0
    %507 = vmatprep.subr.mxu0 0.0
    %508 = vmatpush1.msra.mxu0 0.0
    %509 = vmatprep.subr.mxu0 0.0
    %510 = vmatpush1.msra.mxu0 0.0
    %511 = vmatprep.subr.mxu0 0.0
    %512 = vmatpush1.msra.mxu0 0.0
    %513 = vmatprep.subr.mxu0 0.0
    %514 = vmatpush1.msra.mxu0 0.0
    %515 = vmatprep.subr.mxu0 0.0
    %516 = vmatpush1.msra.mxu0 0.0
    %517 = vmatprep.subr.mxu0 0.0
    %518 = vmatpush1.msra.mxu0 0.0
    %519 = vmatprep.subr.mxu0 0.0
    %520 = vmatpush1.msra.mxu0 0.0
    %521 = vmatprep.subr.mxu0 0.0
    %522 = vmatpush1.msra.mxu0 0.0
    %523 = vmatprep.subr.mxu0 0.0
    %524 = vmatpush1.msra.mxu0 0.0
    %525 = vmatprep.subr.mxu0 0.0
    %526 = vmatpush1.msra.mxu0 0.0
    %527 = vmatprep.subr.mxu0 0.0
    %528 = vmatpush1.msra.mxu0 0.0
    %529 = vmatprep.subr.mxu0 0.0
    %530 = vmatpush1.msra.mxu0 0.0
    %531 = vmatprep.subr.mxu0 0.0
    %532 = vmatpush1.msra.mxu0 0.0
    %533 = vmatprep.subr.mxu0 0.0
    %534 = vmatpush1.msra.mxu0 0.0
    %535 = vmatprep.subr.mxu0 0.0
    %536 = vmatpush1.msra.mxu0 0.0
    %537 = vmatprep.subr.mxu0 0.0
    %538 = vmatpush1.msra.mxu0 0.0
    %539 = vmatprep.subr.mxu0 0.0
    %540 = vmatpush1.msra.mxu0 0.0
    %541 = vmatprep.subr.mxu0 0.0
    %542 = vmatpush1.msra.mxu0 0.0
    %543 = vmatprep.subr.mxu0 0.0
    %544 = vmatpush1.msra.mxu0 0.0
    %545 = vmatprep.subr.mxu0 0.0
    %546 = vmatpush1.msra.mxu0 0.0
    %547 = vmatprep.mubr.f32.mxu0 0.0
    %548 = vmatmul.mubr.f32.gmra.mrb[0].mxu0 %v481
    %v549 = vpop.f32.mrb[0].mxu0
    %v550 = vadd.f32 0.0, %v549
    %v551 = vpop.f32.mrb[0].mxu0
    %552 = vdwg.mxu0
    %v553 = vadd.f32 %v68, %v550
    %v554 = vxor.u32 %v553, 2147483648
    %v555 = vmul.f32 %v554, 1.442695
    %v556 = vpow.pop %v555
    %v557 = vadd.f32 %v556, 1.0
    %v558 = vrcp.pop %v557
    %v559 = vmul.f32 1.0, %v558
    %v560 = vtanh.pop %v553
    %v561 = vmul.f32 %v559, %v357
    %563 = vrot.lane.b32.xlu0 %v560, 68
    %v564 = vpop.permute.xlu0 %563
    %v566 = vmul.f32 %v559, %v564
    %568 = vrot.lane.b32.xlu0 %v566, 20
    %v569 = vpop.permute.xlu0 %568
    %v571 = vadd.f32 %v561, %v569
    %v572 = vtanh.pop %v571
    %574 = vrot.lane.b32.xlu0 %v572, 20
    %v575 = vpop.permute.xlu0 %574
    %v577 = vmul.f32 %v559, %v575
    %v578 = vsel %vm260, %v465, %v449
    %v580 = vsel %vm154, %v578, 0
    %582 = vmatprep.subr.mxu0 0.0
    %583 = vmatpush1.msra.mxu0 %v48
    %584 = vmatprep.subr.mxu0 0.0
    %585 = vmatpush1.msra.mxu0 %v49
    %586 = vmatprep.subr.mxu0 0.0
    %587 = vmatpush1.msra.mxu0 %v50
    %588 = vmatprep.subr.mxu0 0.0
    %589 = vmatpush1.msra.mxu0 %v51
    %590 = vmatprep.subr.mxu0 0.0
    %591 = vmatpush1.msra.mxu0 %v52
    %592 = vmatprep.subr.mxu0 0.0
    %593 = vmatpush1.msra.mxu0 0.0
    %594 = vmatprep.subr.mxu0 0.0
    %595 = vmatpush1.msra.mxu0 0.0
    %596 = vmatprep.subr.mxu0 0.0
    %597 = vmatpush1.msra.mxu0 0.0
    %598 = vmatprep.subr.mxu0 0.0
    %599 = vmatpush1.msra.mxu0 0.0
    %600 = vmatprep.subr.mxu0 0.0
    %601 = vmatpush1.msra.mxu0 0.0
    %602 = vmatprep.subr.mxu0 0.0
    %603 = vmatpush1.msra.mxu0 0.0
    %604 = vmatprep.subr.mxu0 0.0
    %605 = vmatpush1.msra.mxu0 0.0
    %606 = vmatprep.subr.mxu0 0.0
    %607 = vmatpush1.msra.mxu0 0.0
    %608 = vmatprep.subr.mxu0 0.0
    %609 = vmatpush1.msra.mxu0 0.0
    %610 = vmatprep.subr.mxu0 0.0
    %611 = vmatpush1.msra.mxu0 0.0
    %612 = vmatprep.subr.mxu0 0.0
    %613 = vmatpush1.msra.mxu0 0.0
    %614 = vmatprep.subr.mxu0 0.0
    %615 = vmatpush1.msra.mxu0 0.0
    %616 = vmatprep.subr.mxu0 0.0
    %617 = vmatpush1.msra.mxu0 0.0
    %618 = vmatprep.subr.mxu0 0.0
    %619 = vmatpush1.msra.mxu0 0.0
    %620 = vmatprep.subr.mxu0 0.0
    %621 = vmatpush1.msra.mxu0 0.0
    %622 = vmatprep.subr.mxu0 0.0
    %623 = vmatpush1.msra.mxu0 0.0
    %624 = vmatprep.subr.mxu0 0.0
    %625 = vmatpush1.msra.mxu0 0.0
    %626 = vmatprep.subr.mxu0 0.0
    %627 = vmatpush1.msra.mxu0 0.0
    %628 = vmatprep.subr.mxu0 0.0
    %629 = vmatpush1.msra.mxu0 0.0
    %630 = vmatprep.subr.mxu0 0.0
    %631 = vmatpush1.msra.mxu0 0.0
    %632 = vmatprep.subr.mxu0 0.0
    %633 = vmatpush1.msra.mxu0 0.0
    %634 = vmatprep.subr.mxu0 0.0
    %635 = vmatpush1.msra.mxu0 0.0
    %636 = vmatprep.subr.mxu0 0.0
    %637 = vmatpush1.msra.mxu0 0.0
    %638 = vmatprep.subr.mxu0 0.0
    %639 = vmatpush1.msra.mxu0 0.0
    %640 = vmatprep.subr.mxu0 0.0
    %641 = vmatpush1.msra.mxu0 0.0
    %642 = vmatprep.subr.mxu0 0.0
    %643 = vmatpush1.msra.mxu0 0.0
    %644 = vmatprep.subr.mxu0 0.0
    %645 = vmatpush1.msra.mxu0 0.0
    %646 = vmatprep.mubr.f32.mxu0 0.0
    %647 = vmatmul.mubr.f32.gmra.mrb[0].mxu0 %v580
    %v648 = vpop.f32.mrb[0].mxu0
    %v649 = vadd.f32 0.0, %v648
    %v650 = vpop.f32.mrb[0].mxu0
    %651 = vdwg.mxu0
    %v652 = vadd.f32 %v148, %v649
    %v653 = vxor.u32 %v652, 2147483648
    %v654 = vmul.f32 %v653, 1.442695
    %v655 = vpow.pop %v654
    %v656 = vadd.f32 %v655, 1.0
    %v657 = vrcp.pop %v656
    %v658 = vmul.f32 1.0, %v657
    %v659 = vtanh.pop %v652
    %v660 = vmul.f32 %v658, %v456
    %662 = vrot.lane.b32.xlu0 %v659, 68
    %v663 = vpop.permute.xlu0 %662
    %v665 = vmul.f32 %v658, %v663
    %667 = vrot.lane.b32.xlu0 %v665, 20
    %v668 = vpop.permute.xlu0 %667
    %v670 = vadd.f32 %v660, %v668
    %v671 = vtanh.pop %v670
    %673 = vrot.lane.b32.xlu0 %v671, 20
    %v674 = vpop.permute.xlu0 %673
    %v676 = vmul.f32 %v658, %v674
    %678 = vrot.lane.b32.xlu0 %v676, 88
    %v679 = vpop.permute.xlu0 %678
    %682 = vrot.lane.b32.xlu0 %v577, 108
    %v683 = vpop.permute.xlu0 %682
    %685 = vrot.lane.b32.xlu0 %v659, 88
    %v686 = vpop.permute.xlu0 %685
    %688 = vrot.lane.b32.xlu0 %v560, 108
    %v689 = vpop.permute.xlu0 %688
    %v691 = vsel %vm260, %v679, %v683
    %v692 = vsel %vm154, %v691, %v686
    %v693 = vsel %vm263, %v692, %v689
    %v695 = vsel %vm265, %v693, 0
    %697 = vmatprep.subr.mxu0 0.0
    %698 = vmatpush1.msra.mxu0 %v53
    %699 = vmatprep.subr.mxu0 0.0
    %700 = vmatpush1.msra.mxu0 %v54
    %701 = vmatprep.subr.mxu0 0.0
    %702 = vmatpush1.msra.mxu0 %v55
    %703 = vmatprep.subr.mxu0 0.0
    %704 = vmatpush1.msra.mxu0 %v56
    %705 = vmatprep.subr.mxu0 0.0
    %706 = vmatpush1.msra.mxu0 %v57
    %707 = vmatprep.subr.mxu0 0.0
    %708 = vmatpush1.msra.mxu0 %v58
    %709 = vmatprep.subr.mxu0 0.0
    %710 = vmatpush1.msra.mxu0 %v59
    %711 = vmatprep.subr.mxu0 0.0
    %712 = vmatpush1.msra.mxu0 %v60
    %713 = vmatprep.subr.mxu0 0.0
    %714 = vmatpush1.msra.mxu0 %v61
    %715 = vmatprep.subr.mxu0 0.0
    %716 = vmatpush1.msra.mxu0 %v62
    %717 = vmatprep.subr.mxu0 0.0
    %718 = vmatpush1.msra.mxu0 0.0
    %719 = vmatprep.subr.mxu0 0.0
    %720 = vmatpush1.msra.mxu0 0.0
    %721 = vmatprep.subr.mxu0 0.0
    %722 = vmatpush1.msra.mxu0 0.0
    %723 = vmatprep.subr.mxu0 0.0
    %724 = vmatpush1.msra.mxu0 0.0
    %725 = vmatprep.subr.mxu0 0.0
    %726 = vmatpush1.msra.mxu0 0.0
    %727 = vmatprep.subr.mxu0 0.0
    %728 = vmatpush1.msra.mxu0 0.0
    %729 = vmatprep.subr.mxu0 0.0
    %730 = vmatpush1.msra.mxu0 0.0
    %731 = vmatprep.subr.mxu0 0.0
    %732 = vmatpush1.msra.mxu0 0.0
    %733 = vmatprep.subr.mxu0 0.0
    %734 = vmatpush1.msra.mxu0 0.0
    %735 = vmatprep.subr.mxu0 0.0
    %736 = vmatpush1.msra.mxu0 0.0
    %737 = vmatprep.subr.mxu0 0.0
    %738 = vmatpush1.msra.mxu0 0.0
    %739 = vmatprep.subr.mxu0 0.0
    %740 = vmatpush1.msra.mxu0 0.0
    %741 = vmatprep.subr.mxu0 0.0
    %742 = vmatpush1.msra.mxu0 0.0
    %743 = vmatprep.subr.mxu0 0.0
    %744 = vmatpush1.msra.mxu0 0.0
    %745 = vmatprep.subr.mxu0 0.0
    %746 = vmatpush1.msra.mxu0 0.0
    %747 = vmatprep.subr.mxu0 0.0
    %748 = vmatpush1.msra.mxu0 0.0
    %749 = vmatprep.subr.mxu0 0.0
    %750 = vmatpush1.msra.mxu0 0.0
    %751 = vmatprep.subr.mxu0 0.0
    %752 = vmatpush1.msra.mxu0 0.0
    %753 = vmatprep.subr.mxu0 0.0
    %754 = vmatpush1.msra.mxu0 0.0
    %755 = vmatprep.subr.mxu0 0.0
    %756 = vmatpush1.msra.mxu0 0.0
    %757 = vmatprep.subr.mxu0 0.0
    %758 = vmatpush1.msra.mxu0 0.0
    %759 = vmatprep.subr.mxu0 0.0
    %760 = vmatpush1.msra.mxu0 0.0
    %761 = vmatprep.mubr.f32.mxu0 0.0
    %762 = vmatmul.mubr.f32.gmra.mrb[0].mxu0 %v695
    %v763 = vpop.f32.mrb[0].mxu0
    %v764 = vadd.f32 0.0, %v763
    %v765 = vpop.f32.mrb[0].mxu0
    %766 = vdwg.mxu0
    %v767 = vadd.f32 %v68, %v764
    %v768 = vxor.u32 %v767, 2147483648
    %v769 = vmul.f32 %v768, 1.442695
    %v770 = vpow.pop %v769
    %v771 = vadd.f32 %v770, 1.0
    %v772 = vrcp.pop %v771
    %v773 = vmul.f32 1.0, %v772
    %v774 = vtanh.pop %v767
    %v775 = vmul.f32 %v773, %v571
    %777 = vrot.lane.b32.xlu0 %v774, 68
    %v778 = vpop.permute.xlu0 %777
    %v780 = vmul.f32 %v773, %v778
    %782 = vrot.lane.b32.xlu0 %v780, 20
    %v783 = vpop.permute.xlu0 %782
    %v785 = vadd.f32 %v775, %v783
    %v786 = vtanh.pop %v785
    %788 = vrot.lane.b32.xlu0 %v786, 20
    %v789 = vpop.permute.xlu0 %788
    %v791 = vmul.f32 %v773, %v789
    %v792 = vsel %vm260, %v679, %v663
    %v794 = vsel %vm154, %v792, 0
    %796 = vmatprep.subr.mxu0 0.0
    %797 = vmatpush1.msra.mxu0 %v48
    %798 = vmatprep.subr.mxu0 0.0
    %799 = vmatpush1.msra.mxu0 %v49
    %800 = vmatprep.subr.mxu0 0.0
    %801 = vmatpush1.msra.mxu0 %v50
    %802 = vmatprep.subr.mxu0 0.0
    %803 = vmatpush1.msra.mxu0 %v51
    %804 = vmatprep.subr.mxu0 0.0
    %805 = vmatpush1.msra.mxu0 %v52
    %806 = vmatprep.subr.mxu0 0.0
    %807 = vmatpush1.msra.mxu0 0.0
    %808 = vmatprep.subr.mxu0 0.0
    %809 = vmatpush1.msra.mxu0 0.0
    %810 = vmatprep.subr.mxu0 0.0
    %811 = vmatpush1.msra.mxu0 0.0
    %812 = vmatprep.subr.mxu0 0.0
    %813 = vmatpush1.msra.mxu0 0.0
    %814 = vmatprep.subr.mxu0 0.0
    %815 = vmatpush1.msra.mxu0 0.0
    %816 = vmatprep.subr.mxu0 0.0
    %817 = vmatpush1.msra.mxu0 0.0
    %818 = vmatprep.subr.mxu0 0.0
    %819 = vmatpush1.msra.mxu0 0.0
    %820 = vmatprep.subr.mxu0 0.0
    %821 = vmatpush1.msra.mxu0 0.0
    %822 = vmatprep.subr.mxu0 0.0
    %823 = vmatpush1.msra.mxu0 0.0
    %824 = vmatprep.subr.mxu0 0.0
    %825 = vmatpush1.msra.mxu0 0.0
    %826 = vmatprep.subr.mxu0 0.0
    %827 = vmatpush1.msra.mxu0 0.0
    %828 = vmatprep.subr.mxu0 0.0
    %829 = vmatpush1.msra.mxu0 0.0
    %830 = vmatprep.subr.mxu0 0.0
    %831 = vmatpush1.msra.mxu0 0.0
    %832 = vmatprep.subr.mxu0 0.0
    %833 = vmatpush1.msra.mxu0 0.0
    %834 = vmatprep.subr.mxu0 0.0
    %835 = vmatpush1.msra.mxu0 0.0
    %836 = vmatprep.subr.mxu0 0.0
    %837 = vmatpush1.msra.mxu0 0.0
    %838 = vmatprep.subr.mxu0 0.0
    %839 = vmatpush1.msra.mxu0 0.0
    %840 = vmatprep.subr.mxu0 0.0
    %841 = vmatpush1.msra.mxu0 0.0
    %842 = vmatprep.subr.mxu0 0.0
    %843 = vmatpush1.msra.mxu0 0.0
    %844 = vmatprep.subr.mxu0 0.0
    %845 = vmatpush1.msra.mxu0 0.0
    %846 = vmatprep.subr.mxu0 0.0
    %847 = vmatpush1.msra.mxu0 0.0
    %848 = vmatprep.subr.mxu0 0.0
    %849 = vmatpush1.msra.mxu0 0.0
    %850 = vmatprep.subr.mxu0 0.0
    %851 = vmatpush1.msra.mxu0 0.0
    %852 = vmatprep.subr.mxu0 0.0
    %853 = vmatpush1.msra.mxu0 0.0
    %854 = vmatprep.subr.mxu0 0.0
    %855 = vmatpush1.msra.mxu0 0.0
    %856 = vmatprep.subr.mxu0 0.0
    %857 = vmatpush1.msra.mxu0 0.0
    %858 = vmatprep.subr.mxu0 0.0
    %859 = vmatpush1.msra.mxu0 0.0
    %860 = vmatprep.mubr.f32.mxu0 0.0
    %861 = vmatmul.mubr.f32.gmra.mrb[0].mxu0 %v794
    %v862 = vpop.f32.mrb[0].mxu0
    %v863 = vadd.f32 0.0, %v862
    %v864 = vpop.f32.mrb[0].mxu0
    %865 = vdwg.mxu0
    %v866 = vadd.f32 %v149, %v863
    %v867 = vxor.u32 %v866, 2147483648
    %v868 = vmul.f32 %v867, 1.442695
    %v869 = vpow.pop %v868
    %v870 = vadd.f32 %v869, 1.0
    %v871 = vrcp.pop %v870
    %v872 = vmul.f32 1.0, %v871
    %v873 = vtanh.pop %v866
    %v874 = vmul.f32 %v872, %v670
    %876 = vrot.lane.b32.xlu0 %v873, 68
    %v877 = vpop.permute.xlu0 %876
    %v879 = vmul.f32 %v872, %v877
    %881 = vrot.lane.b32.xlu0 %v879, 20
    %v882 = vpop.permute.xlu0 %881
    %v884 = vadd.f32 %v874, %v882
    %v885 = vtanh.pop %v884
    %887 = vrot.lane.b32.xlu0 %v885, 20
    %v888 = vpop.permute.xlu0 %887
    %v890 = vmul.f32 %v872, %v888
    %892 = vrot.lane.b32.xlu0 %v890, 88
    %v893 = vpop.permute.xlu0 %892
    %896 = vrot.lane.b32.xlu0 %v791, 108
    %v897 = vpop.permute.xlu0 %896
    %899 = vrot.lane.b32.xlu0 %v873, 88
    %v900 = vpop.permute.xlu0 %899
    %902 = vrot.lane.b32.xlu0 %v774, 108
    %v903 = vpop.permute.xlu0 %902
    %v905 = vsel %vm260, %v893, %v897
    %v906 = vsel %vm154, %v905, %v900
    %v907 = vsel %vm263, %v906, %v903
    %v909 = vsel %vm265, %v907, 0
    %911 = vmatprep.subr.mxu0 0.0
    %912 = vmatpush1.msra.mxu0 %v53
    %913 = vmatprep.subr.mxu0 0.0
    %914 = vmatpush1.msra.mxu0 %v54
    %915 = vmatprep.subr.mxu0 0.0
    %916 = vmatpush1.msra.mxu0 %v55
    %917 = vmatprep.subr.mxu0 0.0
    %918 = vmatpush1.msra.mxu0 %v56
    %919 = vmatprep.subr.mxu0 0.0
    %920 = vmatpush1.msra.mxu0 %v57
    %921 = vmatprep.subr.mxu0 0.0
    %922 = vmatpush1.msra.mxu0 %v58
    %923 = vmatprep.subr.mxu0 0.0
    %924 = vmatpush1.msra.mxu0 %v59
    %925 = vmatprep.subr.mxu0 0.0
    %926 = vmatpush1.msra.mxu0 %v60
    %927 = vmatprep.subr.mxu0 0.0
    %928 = vmatpush1.msra.mxu0 %v61
    %929 = vmatprep.subr.mxu0 0.0
    %930 = vmatpush1.msra.mxu0 %v62
    %931 = vmatprep.subr.mxu0 0.0
    %932 = vmatpush1.msra.mxu0 0.0
    %933 = vmatprep.subr.mxu0 0.0
    %934 = vmatpush1.msra.mxu0 0.0
    %935 = vmatprep.subr.mxu0 0.0
    %936 = vmatpush1.msra.mxu0 0.0
    %937 = vmatprep.subr.mxu0 0.0
    %938 = vmatpush1.msra.mxu0 0.0
    %939 = vmatprep.subr.mxu0 0.0
    %940 = vmatpush1.msra.mxu0 0.0
    %941 = vmatprep.subr.mxu0 0.0
    %942 = vmatpush1.msra.mxu0 0.0
    %943 = vmatprep.subr.mxu0 0.0
    %944 = vmatpush1.msra.mxu0 0.0
    %945 = vmatprep.subr.mxu0 0.0
    %946 = vmatpush1.msra.mxu0 0.0
    %947 = vmatprep.subr.mxu0 0.0
    %948 = vmatpush1.msra.mxu0 0.0
    %949 = vmatprep.subr.mxu0 0.0
    %950 = vmatpush1.msra.mxu0 0.0
    %951 = vmatprep.subr.mxu0 0.0
    %952 = vmatpush1.msra.mxu0 0.0
    %953 = vmatprep.subr.mxu0 0.0
    %954 = vmatpush1.msra.mxu0 0.0
    %955 = vmatprep.subr.mxu0 0.0
    %956 = vmatpush1.msra.mxu0 0.0
    %957 = vmatprep.subr.mxu0 0.0
    %958 = vmatpush1.msra.mxu0 0.0
    %959 = vmatprep.subr.mxu0 0.0
    %960 = vmatpush1.msra.mxu0 0.0
    %961 = vmatprep.subr.mxu0 0.0
    %962 = vmatpush1.msra.mxu0 0.0
    %963 = vmatprep.subr.mxu0 0.0
    %964 = vmatpush1.msra.mxu0 0.0
    %965 = vmatprep.subr.mxu0 0.0
    %966 = vmatpush1.msra.mxu0 0.0
    %967 = vmatprep.subr.mxu0 0.0
    %968 = vmatpush1.msra.mxu0 0.0
    %969 = vmatprep.subr.mxu0 0.0
    %970 = vmatpush1.msra.mxu0 0.0
    %971 = vmatprep.subr.mxu0 0.0
    %972 = vmatpush1.msra.mxu0 0.0
    %973 = vmatprep.subr.mxu0 0.0
    %974 = vmatpush1.msra.mxu0 0.0
    %975 = vmatprep.mubr.f32.mxu0 0.0
    %976 = vmatmul.mubr.f32.gmra.mrb[0].mxu0 %v909
    %v977 = vpop.f32.mrb[0].mxu0
    %v978 = vadd.f32 0.0, %v977
    %v979 = vpop.f32.mrb[0].mxu0
    %980 = vdwg.mxu0
    %v981 = vadd.f32 %v68, %v978
    %v982 = vxor.u32 %v981, 2147483648
    %v983 = vmul.f32 %v982, 1.442695
    %v984 = vpow.pop %v983
    %v985 = vadd.f32 %v984, 1.0
    %v986 = vrcp.pop %v985
    %v987 = vmul.f32 1.0, %v986
    %v988 = vtanh.pop %v981
    %v989 = vmul.f32 %v987, %v785
    %991 = vrot.lane.b32.xlu0 %v988, 68
    %v992 = vpop.permute.xlu0 %991
    %v994 = vmul.f32 %v987, %v992
    %996 = vrot.lane.b32.xlu0 %v994, 20
    %v997 = vpop.permute.xlu0 %996
    %v999 = vadd.f32 %v989, %v997
    %v1000 = vtanh.pop %v999
    %1002 = vrot.lane.b32.xlu0 %v1000, 20
    %v1003 = vpop.permute.xlu0 %1002
    %v1005 = vmul.f32 %v987, %v1003
    %v1006 = vsel %vm260, %v893, %v877
    %v1008 = vsel %vm154, %v1006, 0
    %1010 = vmatprep.subr.mxu0 0.0
    %1011 = vmatpush1.msra.mxu0 %v48
    %1012 = vmatprep.subr.mxu0 0.0
    %1013 = vmatpush1.msra.mxu0 %v49
    %1014 = vmatprep.subr.mxu0 0.0
    %1015 = vmatpush1.msra.mxu0 %v50
    %1016 = vmatprep.subr.mxu0 0.0
    %1017 = vmatpush1.msra.mxu0 %v51
    %1018 = vmatprep.subr.mxu0 0.0
    %1019 = vmatpush1.msra.mxu0 %v52
    %1020 = vmatprep.subr.mxu0 0.0
    %1021 = vmatpush1.msra.mxu0 0.0
    %1022 = vmatprep.subr.mxu0 0.0
    %1023 = vmatpush1.msra.mxu0 0.0
    %1024 = vmatprep.subr.mxu0 0.0
    %1025 = vmatpush1.msra.mxu0 0.0
    %1026 = vmatprep.subr.mxu0 0.0
    %1027 = vmatpush1.msra.mxu0 0.0
    %1028 = vmatprep.subr.mxu0 0.0
    %1029 = vmatpush1.msra.mxu0 0.0
    %1030 = vmatprep.subr.mxu0 0.0
    %1031 = vmatpush1.msra.mxu0 0.0
    %1032 = vmatprep.subr.mxu0 0.0
    %1033 = vmatpush1.msra.mxu0 0.0
    %1034 = vmatprep.subr.mxu0 0.0
    %1035 = vmatpush1.msra.mxu0 0.0
    %1036 = vmatprep.subr.mxu0 0.0
    %1037 = vmatpush1.msra.mxu0 0.0
    %1038 = vmatprep.subr.mxu0 0.0
    %1039 = vmatpush1.msra.mxu0 0.0
    %1040 = vmatprep.subr.mxu0 0.0
    %1041 = vmatpush1.msra.mxu0 0.0
    %1042 = vmatprep.subr.mxu0 0.0
    %1043 = vmatpush1.msra.mxu0 0.0
    %1044 = vmatprep.subr.mxu0 0.0
    %1045 = vmatpush1.msra.mxu0 0.0
    %1046 = vmatprep.subr.mxu0 0.0
    %1047 = vmatpush1.msra.mxu0 0.0
    %1048 = vmatprep.subr.mxu0 0.0
    %1049 = vmatpush1.msra.mxu0 0.0
    %1050 = vmatprep.subr.mxu0 0.0
    %1051 = vmatpush1.msra.mxu0 0.0
    %1052 = vmatprep.subr.mxu0 0.0
    %1053 = vmatpush1.msra.mxu0 0.0
    %1054 = vmatprep.subr.mxu0 0.0
    %1055 = vmatpush1.msra.mxu0 0.0
    %1056 = vmatprep.subr.mxu0 0.0
    %1057 = vmatpush1.msra.mxu0 0.0
    %1058 = vmatprep.subr.mxu0 0.0
    %1059 = vmatpush1.msra.mxu0 0.0
    %1060 = vmatprep.subr.mxu0 0.0
    %1061 = vmatpush1.msra.mxu0 0.0
    %1062 = vmatprep.subr.mxu0 0.0
    %1063 = vmatpush1.msra.mxu0 0.0
    %1064 = vmatprep.subr.mxu0 0.0
    %1065 = vmatpush1.msra.mxu0 0.0
    %1066 = vmatprep.subr.mxu0 0.0
    %1067 = vmatpush1.msra.mxu0 0.0
    %1068 = vmatprep.subr.mxu0 0.0
    %1069 = vmatpush1.msra.mxu0 0.0
    %1070 = vmatprep.subr.mxu0 0.0
    %1071 = vmatpush1.msra.mxu0 0.0
    %1072 = vmatprep.subr.mxu0 0.0
    %1073 = vmatpush1.msra.mxu0 0.0
    %1074 = vmatprep.mubr.f32.mxu0 0.0
    %1075 = vmatmul.mubr.f32.gmra.mrb[0].mxu0 %v1008
    %v1076 = vpop.f32.mrb[0].mxu0
    %v1077 = vadd.f32 0.0, %v1076
    %v1078 = vpop.f32.mrb[0].mxu0
    %1079 = vdwg.mxu0
    %v1080 = vadd.f32 %v150, %v1077
    %v1081 = vxor.u32 %v1080, 2147483648
    %v1082 = vmul.f32 %v1081, 1.442695
    %v1083 = vpow.pop %v1082
    %v1084 = vadd.f32 %v1083, 1.0
    %v1085 = vrcp.pop %v1084
    %v1086 = vmul.f32 1.0, %v1085
    %v1087 = vtanh.pop %v1080
    %v1088 = vmul.f32 %v1086, %v884
    %1090 = vrot.lane.b32.xlu0 %v1087, 68
    %v1091 = vpop.permute.xlu0 %1090
    %v1093 = vmul.f32 %v1086, %v1091
    %1095 = vrot.lane.b32.xlu0 %v1093, 20
    %v1096 = vpop.permute.xlu0 %1095
    %v1098 = vadd.f32 %v1088, %v1096
    %v1099 = vtanh.pop %v1098
    %1101 = vrot.lane.b32.xlu0 %v1099, 20
    %v1102 = vpop.permute.xlu0 %1101
    %v1104 = vmul.f32 %v1086, %v1102
    %1106 = vrot.lane.b32.xlu0 %v1104, 88
    %v1107 = vpop.permute.xlu0 %1106
    %1110 = vrot.lane.b32.xlu0 %v1005, 108
    %v1111 = vpop.permute.xlu0 %1110
    %1113 = vrot.lane.b32.xlu0 %v1087, 88
    %v1114 = vpop.permute.xlu0 %1113
    %1116 = vrot.lane.b32.xlu0 %v988, 108
    %v1117 = vpop.permute.xlu0 %1116
    %v1119 = vsel %vm260, %v1107, %v1111
    %v1120 = vsel %vm154, %v1119, %v1114
    %v1121 = vsel %vm263, %v1120, %v1117
    %v1123 = vsel %vm265, %v1121, 0
    %1125 = vmatprep.subr.mxu0 0.0
    %1126 = vmatpush1.msra.mxu0 %v53
    %1127 = vmatprep.subr.mxu0 0.0
    %1128 = vmatpush1.msra.mxu0 %v54
    %1129 = vmatprep.subr.mxu0 0.0
    %1130 = vmatpush1.msra.mxu0 %v55
    %1131 = vmatprep.subr.mxu0 0.0
    %1132 = vmatpush1.msra.mxu0 %v56
    %1133 = vmatprep.subr.mxu0 0.0
    %1134 = vmatpush1.msra.mxu0 %v57
    %1135 = vmatprep.subr.mxu0 0.0
    %1136 = vmatpush1.msra.mxu0 %v58
    %1137 = vmatprep.subr.mxu0 0.0
    %1138 = vmatpush1.msra.mxu0 %v59
    %1139 = vmatprep.subr.mxu0 0.0
    %1140 = vmatpush1.msra.mxu0 %v60
    %1141 = vmatprep.subr.mxu0 0.0
    %1142 = vmatpush1.msra.mxu0 %v61
    %1143 = vmatprep.subr.mxu0 0.0
    %1144 = vmatpush1.msra.mxu0 %v62
    %1145 = vmatprep.subr.mxu0 0.0
    %1146 = vmatpush1.msra.mxu0 0.0
    %1147 = vmatprep.subr.mxu0 0.0
    %1148 = vmatpush1.msra.mxu0 0.0
    %1149 = vmatprep.subr.mxu0 0.0
    %1150 = vmatpush1.msra.mxu0 0.0
    %1151 = vmatprep.subr.mxu0 0.0
    %1152 = vmatpush1.msra.mxu0 0.0
    %1153 = vmatprep.subr.mxu0 0.0
    %1154 = vmatpush1.msra.mxu0 0.0
    %1155 = vmatprep.subr.mxu0 0.0
    %1156 = vmatpush1.msra.mxu0 0.0
    %1157 = vmatprep.subr.mxu0 0.0
    %1158 = vmatpush1.msra.mxu0 0.0
    %1159 = vmatprep.subr.mxu0 0.0
    %1160 = vmatpush1.msra.mxu0 0.0
    %1161 = vmatprep.subr.mxu0 0.0
    %1162 = vmatpush1.msra.mxu0 0.0
    %1163 = vmatprep.subr.mxu0 0.0
    %1164 = vmatpush1.msra.mxu0 0.0
    %1165 = vmatprep.subr.mxu0 0.0
    %1166 = vmatpush1.msra.mxu0 0.0
    %1167 = vmatprep.subr.mxu0 0.0
    %1168 = vmatpush1.msra.mxu0 0.0
    %1169 = vmatprep.subr.mxu0 0.0
    %1170 = vmatpush1.msra.mxu0 0.0
    %1171 = vmatprep.subr.mxu0 0.0
    %1172 = vmatpush1.msra.mxu0 0.0
    %1173 = vmatprep.subr.mxu0 0.0
    %1174 = vmatpush1.msra.mxu0 0.0
    %1175 = vmatprep.subr.mxu0 0.0
    %1176 = vmatpush1.msra.mxu0 0.0
    %1177 = vmatprep.subr.mxu0 0.0
    %1178 = vmatpush1.msra.mxu0 0.0
    %1179 = vmatprep.subr.mxu0 0.0
    %1180 = vmatpush1.msra.mxu0 0.0
    %1181 = vmatprep.subr.mxu0 0.0
    %1182 = vmatpush1.msra.mxu0 0.0
    %1183 = vmatprep.subr.mxu0 0.0
    %1184 = vmatpush1.msra.mxu0 0.0
    %1185 = vmatprep.subr.mxu0 0.0
    %1186 = vmatpush1.msra.mxu0 0.0
    %1187 = vmatprep.subr.mxu0 0.0
    %1188 = vmatpush1.msra.mxu0 0.0
    %1189 = vmatprep.mubr.f32.mxu0 0.0
    %1190 = vmatmul.mubr.f32.gmra.mrb[0].mxu0 %v1123
    %v1191 = vpop.f32.mrb[0].mxu0
    %v1192 = vadd.f32 0.0, %v1191
    %v1193 = vpop.f32.mrb[0].mxu0
    %1194 = vdwg.mxu0
    %v1195 = vadd.f32 %v68, %v1192
    %v1196 = vxor.u32 %v1195, 2147483648
    %v1197 = vmul.f32 %v1196, 1.442695
    %v1198 = vpow.pop %v1197
    %v1199 = vadd.f32 %v1198, 1.0
    %v1200 = vrcp.pop %v1199
    %v1201 = vmul.f32 1.0, %v1200
    %v1202 = vtanh.pop %v1195
    %v1203 = vmul.f32 %v1201, %v999
    %1205 = vrot.lane.b32.xlu0 %v1202, 68
    %v1206 = vpop.permute.xlu0 %1205
    %v1208 = vmul.f32 %v1201, %v1206
    %1210 = vrot.lane.b32.xlu0 %v1208, 20
    %v1211 = vpop.permute.xlu0 %1210
    %v1213 = vadd.f32 %v1203, %v1211
    %v1214 = vtanh.pop %v1213
    %1216 = vrot.lane.b32.xlu0 %v1214, 20
    %v1217 = vpop.permute.xlu0 %1216
    %v1219 = vmul.f32 %v1201, %v1217
    %v1220 = vsel %vm260, %v1107, %v1091
    %v1222 = vsel %vm154, %v1220, 0
    %1224 = vmatprep.subr.mxu0 0.0
    %1225 = vmatpush1.msra.mxu0 %v48
    %1226 = vmatprep.subr.mxu0 0.0
    %1227 = vmatpush1.msra.mxu0 %v49
    %1228 = vmatprep.subr.mxu0 0.0
    %1229 = vmatpush1.msra.mxu0 %v50
    %1230 = vmatprep.subr.mxu0 0.0
    %1231 = vmatpush1.msra.mxu0 %v51
    %1232 = vmatprep.subr.mxu0 0.0
    %1233 = vmatpush1.msra.mxu0 %v52
    %1234 = vmatprep.subr.mxu0 0.0
    %1235 = vmatpush1.msra.mxu0 0.0
    %1236 = vmatprep.subr.mxu0 0.0
    %1237 = vmatpush1.msra.mxu0 0.0
    %1238 = vmatprep.subr.mxu0 0.0
    %1239 = vmatpush1.msra.mxu0 0.0
    %1240 = vmatprep.subr.mxu0 0.0
    %1241 = vmatpush1.msra.mxu0 0.0
    %1242 = vmatprep.subr.mxu0 0.0
    %1243 = vmatpush1.msra.mxu0 0.0
    %1244 = vmatprep.subr.mxu0 0.0
    %1245 = vmatpush1.msra.mxu0 0.0
    %1246 = vmatprep.subr.mxu0 0.0
    %1247 = vmatpush1.msra.mxu0 0.0
    %1248 = vmatprep.subr.mxu0 0.0
    %1249 = vmatpush1.msra.mxu0 0.0
    %1250 = vmatprep.subr.mxu0 0.0
    %1251 = vmatpush1.msra.mxu0 0.0
    %1252 = vmatprep.subr.mxu0 0.0
    %1253 = vmatpush1.msra.mxu0 0.0
    %1254 = vmatprep.subr.mxu0 0.0
    %1255 = vmatpush1.msra.mxu0 0.0
    %1256 = vmatprep.subr.mxu0 0.0
    %1257 = vmatpush1.msra.mxu0 0.0
    %1258 = vmatprep.subr.mxu0 0.0
    %1259 = vmatpush1.msra.mxu0 0.0
    %1260 = vmatprep.subr.mxu0 0.0
    %1261 = vmatpush1.msra.mxu0 0.0
    %1262 = vmatprep.subr.mxu0 0.0
    %1263 = vmatpush1.msra.mxu0 0.0
    %1264 = vmatprep.subr.mxu0 0.0
    %1265 = vmatpush1.msra.mxu0 0.0
    %1266 = vmatprep.subr.mxu0 0.0
    %1267 = vmatpush1.msra.mxu0 0.0
    %1268 = vmatprep.subr.mxu0 0.0
    %1269 = vmatpush1.msra.mxu0 0.0
    %1270 = vmatprep.subr.mxu0 0.0
    %1271 = vmatpush1.msra.mxu0 0.0
    %1272 = vmatprep.subr.mxu0 0.0
    %1273 = vmatpush1.msra.mxu0 0.0
    %1274 = vmatprep.subr.mxu0 0.0
    %1275 = vmatpush1.msra.mxu0 0.0
    %1276 = vmatprep.subr.mxu0 0.0
    %1277 = vmatpush1.msra.mxu0 0.0
    %1278 = vmatprep.subr.mxu0 0.0
    %1279 = vmatpush1.msra.mxu0 0.0
    %1280 = vmatprep.subr.mxu0 0.0
    %1281 = vmatpush1.msra.mxu0 0.0
    %1282 = vmatprep.subr.mxu0 0.0
    %1283 = vmatpush1.msra.mxu0 0.0
    %1284 = vmatprep.subr.mxu0 0.0
    %1285 = vmatpush1.msra.mxu0 0.0
    %1286 = vmatprep.subr.mxu0 0.0
    %1287 = vmatpush1.msra.mxu0 0.0
    %1288 = vmatprep.mubr.f32.mxu0 0.0
    %1289 = vmatmul.mubr.f32.gmra.mrb[0].mxu0 %v1222
    %v1290 = vpop.f32.mrb[0].mxu0
    %v1291 = vadd.f32 0.0, %v1290
    %v1292 = vpop.f32.mrb[0].mxu0
    %1293 = vdwg.mxu0
    %v1294 = vadd.f32 %v151, %v1291
    %v1295 = vxor.u32 %v1294, 2147483648
    %v1296 = vmul.f32 %v1295, 1.442695
    %v1297 = vpow.pop %v1296
    %v1298 = vadd.f32 %v1297, 1.0
    %v1299 = vrcp.pop %v1298
    %v1300 = vmul.f32 1.0, %v1299
    %v1301 = vtanh.pop %v1294
    %v1302 = vmul.f32 %v1300, %v1098
    %1304 = vrot.lane.b32.xlu0 %v1301, 68
    %v1305 = vpop.permute.xlu0 %1304
    %v1307 = vmul.f32 %v1300, %v1305
    %1309 = vrot.lane.b32.xlu0 %v1307, 20
    %v1310 = vpop.permute.xlu0 %1309
    %v1312 = vadd.f32 %v1302, %v1310
    %v1313 = vtanh.pop %v1312
    %1315 = vrot.lane.b32.xlu0 %v1313, 20
    %v1316 = vpop.permute.xlu0 %1315
    %v1318 = vmul.f32 %v1300, %v1316
    %1320 = vrot.lane.b32.xlu0 %v1318, 88
    %v1321 = vpop.permute.xlu0 %1320
    %1324 = vrot.lane.b32.xlu0 %v1219, 108
    %v1325 = vpop.permute.xlu0 %1324
    %1327 = vrot.lane.b32.xlu0 %v1301, 88
    %v1328 = vpop.permute.xlu0 %1327
    %1330 = vrot.lane.b32.xlu0 %v1202, 108
    %v1331 = vpop.permute.xlu0 %1330
    %v1333 = vsel %vm260, %v1321, %v1325
    %v1334 = vsel %vm154, %v1333, %v1328
    %v1335 = vsel %vm263, %v1334, %v1331
    %v1337 = vsel %vm265, %v1335, 0
    %1339 = vmatprep.subr.mxu0 0.0
    %1340 = vmatpush1.msra.mxu0 %v53
    %1341 = vmatprep.subr.mxu0 0.0
    %1342 = vmatpush1.msra.mxu0 %v54
    %1343 = vmatprep.subr.mxu0 0.0
    %1344 = vmatpush1.msra.mxu0 %v55
    %1345 = vmatprep.subr.mxu0 0.0
    %1346 = vmatpush1.msra.mxu0 %v56
    %1347 = vmatprep.subr.mxu0 0.0
    %1348 = vmatpush1.msra.mxu0 %v57
    %1349 = vmatprep.subr.mxu0 0.0
    %1350 = vmatpush1.msra.mxu0 %v58
    %1351 = vmatprep.subr.mxu0 0.0
    %1352 = vmatpush1.msra.mxu0 %v59
    %1353 = vmatprep.subr.mxu0 0.0
    %1354 = vmatpush1.msra.mxu0 %v60
    %1355 = vmatprep.subr.mxu0 0.0
    %1356 = vmatpush1.msra.mxu0 %v61
    %1357 = vmatprep.subr.mxu0 0.0
    %1358 = vmatpush1.msra.mxu0 %v62
    %1359 = vmatprep.subr.mxu0 0.0
    %1360 = vmatpush1.msra.mxu0 0.0
    %1361 = vmatprep.subr.mxu0 0.0
    %1362 = vmatpush1.msra.mxu0 0.0
    %1363 = vmatprep.subr.mxu0 0.0
    %1364 = vmatpush1.msra.mxu0 0.0
    %1365 = vmatprep.subr.mxu0 0.0
    %1366 = vmatpush1.msra.mxu0 0.0
    %1367 = vmatprep.subr.mxu0 0.0
    %1368 = vmatpush1.msra.mxu0 0.0
    %1369 = vmatprep.subr.mxu0 0.0
    %1370 = vmatpush1.msra.mxu0 0.0
    %1371 = vmatprep.subr.mxu0 0.0
    %1372 = vmatpush1.msra.mxu0 0.0
    %1373 = vmatprep.subr.mxu0 0.0
    %1374 = vmatpush1.msra.mxu0 0.0
    %1375 = vmatprep.subr.mxu0 0.0
    %1376 = vmatpush1.msra.mxu0 0.0
    %1377 = vmatprep.subr.mxu0 0.0
    %1378 = vmatpush1.msra.mxu0 0.0
    %1379 = vmatprep.subr.mxu0 0.0
    %1380 = vmatpush1.msra.mxu0 0.0
    %1381 = vmatprep.subr.mxu0 0.0
    %1382 = vmatpush1.msra.mxu0 0.0
    %1383 = vmatprep.subr.mxu0 0.0
    %1384 = vmatpush1.msra.mxu0 0.0
    %1385 = vmatprep.subr.mxu0 0.0
    %1386 = vmatpush1.msra.mxu0 0.0
    %1387 = vmatprep.subr.mxu0 0.0
    %1388 = vmatpush1.msra.mxu0 0.0
    %1389 = vmatprep.subr.mxu0 0.0
    %1390 = vmatpush1.msra.mxu0 0.0
    %1391 = vmatprep.subr.mxu0 0.0
    %1392 = vmatpush1.msra.mxu0 0.0
    %1393 = vmatprep.subr.mxu0 0.0
    %1394 = vmatpush1.msra.mxu0 0.0
    %1395 = vmatprep.subr.mxu0 0.0
    %1396 = vmatpush1.msra.mxu0 0.0
    %1397 = vmatprep.subr.mxu0 0.0
    %1398 = vmatpush1.msra.mxu0 0.0
    %1399 = vmatprep.subr.mxu0 0.0
    %1400 = vmatpush1.msra.mxu0 0.0
    %1401 = vmatprep.subr.mxu0 0.0
    %1402 = vmatpush1.msra.mxu0 0.0
    %1403 = vmatprep.mubr.f32.mxu0 0.0
    %1404 = vmatmul.mubr.f32.gmra.mrb[0].mxu0 %v1337
    %v1405 = vpop.f32.mrb[0].mxu0
    %v1406 = vadd.f32 0.0, %v1405
    %v1407 = vpop.f32.mrb[0].mxu0
    %1408 = vdwg.mxu0
    %v1409 = vadd.f32 %v68, %v1406
    %v1410 = vxor.u32 %v1409, 2147483648
    %v1411 = vmul.f32 %v1410, 1.442695
    %v1412 = vpow.pop %v1411
    %v1413 = vadd.f32 %v1412, 1.0
    %v1414 = vrcp.pop %v1413
    %v1415 = vmul.f32 1.0, %v1414
    %v1416 = vtanh.pop %v1409
    %v1417 = vmul.f32 %v1415, %v1213
    %1419 = vrot.lane.b32.xlu0 %v1416, 68
    %v1420 = vpop.permute.xlu0 %1419
    %v1422 = vmul.f32 %v1415, %v1420
    %1424 = vrot.lane.b32.xlu0 %v1422, 20
    %v1425 = vpop.permute.xlu0 %1424
    %v1427 = vadd.f32 %v1417, %v1425
    %v1428 = vtanh.pop %v1427
    %1430 = vrot.lane.b32.xlu0 %v1428, 20
    %v1431 = vpop.permute.xlu0 %1430
    %v1433 = vmul.f32 %v1415, %v1431
    %v1434 = vsel %vm260, %v1321, %v1305
    %v1436 = vsel %vm154, %v1434, 0
    %1438 = vmatprep.subr.mxu0 0.0
    %1439 = vmatpush1.msra.mxu0 %v48
    %1440 = vmatprep.subr.mxu0 0.0
    %1441 = vmatpush1.msra.mxu0 %v49
    %1442 = vmatprep.subr.mxu0 0.0
    %1443 = vmatpush1.msra.mxu0 %v50
    %1444 = vmatprep.subr.mxu0 0.0
    %1445 = vmatpush1.msra.mxu0 %v51
    %1446 = vmatprep.subr.mxu0 0.0
    %1447 = vmatpush1.msra.mxu0 %v52
    %1448 = vmatprep.subr.mxu0 0.0
    %1449 = vmatpush1.msra.mxu0 0.0
    %1450 = vmatprep.subr.mxu0 0.0
    %1451 = vmatpush1.msra.mxu0 0.0
    %1452 = vmatprep.subr.mxu0 0.0
    %1453 = vmatpush1.msra.mxu0 0.0
    %1454 = vmatprep.subr.mxu0 0.0
    %1455 = vmatpush1.msra.mxu0 0.0
    %1456 = vmatprep.subr.mxu0 0.0
    %1457 = vmatpush1.msra.mxu0 0.0
    %1458 = vmatprep.subr.mxu0 0.0
    %1459 = vmatpush1.msra.mxu0 0.0
    %1460 = vmatprep.subr.mxu0 0.0
    %1461 = vmatpush1.msra.mxu0 0.0
    %1462 = vmatprep.subr.mxu0 0.0
    %1463 = vmatpush1.msra.mxu0 0.0
    %1464 = vmatprep.subr.mxu0 0.0
    %1465 = vmatpush1.msra.mxu0 0.0
    %1466 = vmatprep.subr.mxu0 0.0
    %1467 = vmatpush1.msra.mxu0 0.0
    %1468 = vmatprep.subr.mxu0 0.0
    %1469 = vmatpush1.msra.mxu0 0.0
    %1470 = vmatprep.subr.mxu0 0.0
    %1471 = vmatpush1.msra.mxu0 0.0
    %1472 = vmatprep.subr.mxu0 0.0
    %1473 = vmatpush1.msra.mxu0 0.0
    %1474 = vmatprep.subr.mxu0 0.0
    %1475 = vmatpush1.msra.mxu0 0.0
    %1476 = vmatprep.subr.mxu0 0.0
    %1477 = vmatpush1.msra.mxu0 0.0
    %1478 = vmatprep.subr.mxu0 0.0
    %1479 = vmatpush1.msra.mxu0 0.0
    %1480 = vmatprep.subr.mxu0 0.0
    %1481 = vmatpush1.msra.mxu0 0.0
    %1482 = vmatprep.subr.mxu0 0.0
    %1483 = vmatpush1.msra.mxu0 0.0
    %1484 = vmatprep.subr.mxu0 0.0
    %1485 = vmatpush1.msra.mxu0 0.0
    %1486 = vmatprep.subr.mxu0 0.0
    %1487 = vmatpush1.msra.mxu0 0.0
    %1488 = vmatprep.subr.mxu0 0.0
    %1489 = vmatpush1.msra.mxu0 0.0
    %1490 = vmatprep.subr.mxu0 0.0
    %1491 = vmatpush1.msra.mxu0 0.0
    %1492 = vmatprep.subr.mxu0 0.0
    %1493 = vmatpush1.msra.mxu0 0.0
    %1494 = vmatprep.subr.mxu0 0.0
    %1495 = vmatpush1.msra.mxu0 0.0
    %1496 = vmatprep.subr.mxu0 0.0
    %1497 = vmatpush1.msra.mxu0 0.0
    %1498 = vmatprep.subr.mxu0 0.0
    %1499 = vmatpush1.msra.mxu0 0.0
    %1500 = vmatprep.subr.mxu0 0.0
    %1501 = vmatpush1.msra.mxu0 0.0
    %1502 = vmatprep.mubr.f32.mxu0 0.0
    %1503 = vmatmul.mubr.f32.gmra.mrb[0].mxu0 %v1436
    %v1504 = vpop.f32.mrb[0].mxu0
    %v1505 = vadd.f32 0.0, %v1504
    %v1506 = vpop.f32.mrb[0].mxu0
    %1507 = vdwg.mxu0
    %v1508 = vadd.f32 %v152, %v1505
    %v1509 = vxor.u32 %v1508, 2147483648
    %v1510 = vmul.f32 %v1509, 1.442695
    %v1511 = vpow.pop %v1510
    %v1512 = vadd.f32 %v1511, 1.0
    %v1513 = vrcp.pop %v1512
    %v1514 = vmul.f32 1.0, %v1513
    %v1515 = vtanh.pop %v1508
    %v1516 = vmul.f32 %v1514, %v1312
    %1518 = vrot.lane.b32.xlu0 %v1515, 68
    %v1519 = vpop.permute.xlu0 %1518
    %v1521 = vmul.f32 %v1514, %v1519
    %1523 = vrot.lane.b32.xlu0 %v1521, 20
    %v1524 = vpop.permute.xlu0 %1523
    %v1526 = vadd.f32 %v1516, %v1524
    %v1527 = vtanh.pop %v1526
    %1529 = vrot.lane.b32.xlu0 %v1527, 20
    %v1530 = vpop.permute.xlu0 %1529
    %v1532 = vmul.f32 %v1514, %v1530
    %1534 = vrot.lane.b32.xlu0 %v1532, 88
    %v1535 = vpop.permute.xlu0 %1534
    %1538 = vrot.lane.b32.xlu0 %v1433, 108
    %v1539 = vpop.permute.xlu0 %1538
    %1541 = vrot.lane.b32.xlu0 %v1515, 88
    %v1542 = vpop.permute.xlu0 %1541
    %1544 = vrot.lane.b32.xlu0 %v1416, 108
    %v1545 = vpop.permute.xlu0 %1544
    %v1547 = vsel %vm260, %v1535, %v1539
    %v1548 = vsel %vm154, %v1547, %v1542
    %v1549 = vsel %vm263, %v1548, %v1545
    %v1551 = vsel %vm265, %v1549, 0
    %1553 = vmatprep.subr.mxu0 0.0
    %1554 = vmatpush1.msra.mxu0 %v53
    %1555 = vmatprep.subr.mxu0 0.0
    %1556 = vmatpush1.msra.mxu0 %v54
    %1557 = vmatprep.subr.mxu0 0.0
    %1558 = vmatpush1.msra.mxu0 %v55
    %1559 = vmatprep.subr.mxu0 0.0
    %1560 = vmatpush1.msra.mxu0 %v56
    %1561 = vmatprep.subr.mxu0 0.0
    %1562 = vmatpush1.msra.mxu0 %v57
    %1563 = vmatprep.subr.mxu0 0.0
    %1564 = vmatpush1.msra.mxu0 %v58
    %1565 = vmatprep.subr.mxu0 0.0
    %1566 = vmatpush1.msra.mxu0 %v59
    %1567 = vmatprep.subr.mxu0 0.0
    %1568 = vmatpush1.msra.mxu0 %v60
    %1569 = vmatprep.subr.mxu0 0.0
    %1570 = vmatpush1.msra.mxu0 %v61
    %1571 = vmatprep.subr.mxu0 0.0
    %1572 = vmatpush1.msra.mxu0 %v62
    %1573 = vmatprep.subr.mxu0 0.0
    %1574 = vmatpush1.msra.mxu0 0.0
    %1575 = vmatprep.subr.mxu0 0.0
    %1576 = vmatpush1.msra.mxu0 0.0
    %1577 = vmatprep.subr.mxu0 0.0
    %1578 = vmatpush1.msra.mxu0 0.0
    %1579 = vmatprep.subr.mxu0 0.0
    %1580 = vmatpush1.msra.mxu0 0.0
    %1581 = vmatprep.subr.mxu0 0.0
    %1582 = vmatpush1.msra.mxu0 0.0
    %1583 = vmatprep.subr.mxu0 0.0
    %1584 = vmatpush1.msra.mxu0 0.0
    %1585 = vmatprep.subr.mxu0 0.0
    %1586 = vmatpush1.msra.mxu0 0.0
    %1587 = vmatprep.subr.mxu0 0.0
    %1588 = vmatpush1.msra.mxu0 0.0
    %1589 = vmatprep.subr.mxu0 0.0
    %1590 = vmatpush1.msra.mxu0 0.0
    %1591 = vmatprep.subr.mxu0 0.0
    %1592 = vmatpush1.msra.mxu0 0.0
    %1593 = vmatprep.subr.mxu0 0.0
    %1594 = vmatpush1.msra.mxu0 0.0
    %1595 = vmatprep.subr.mxu0 0.0
    %1596 = vmatpush1.msra.mxu0 0.0
    %1597 = vmatprep.subr.mxu0 0.0
    %1598 = vmatpush1.msra.mxu0 0.0
    %1599 = vmatprep.subr.mxu0 0.0
    %1600 = vmatpush1.msra.mxu0 0.0
    %1601 = vmatprep.subr.mxu0 0.0
    %1602 = vmatpush1.msra.mxu0 0.0
    %1603 = vmatprep.subr.mxu0 0.0
    %1604 = vmatpush1.msra.mxu0 0.0
    %1605 = vmatprep.subr.mxu0 0.0
    %1606 = vmatpush1.msra.mxu0 0.0
    %1607 = vmatprep.subr.mxu0 0.0
    %1608 = vmatpush1.msra.mxu0 0.0
    %1609 = vmatprep.subr.mxu0 0.0
    %1610 = vmatpush1.msra.mxu0 0.0
    %1611 = vmatprep.subr.mxu0 0.0
    %1612 = vmatpush1.msra.mxu0 0.0
    %1613 = vmatprep.subr.mxu0 0.0
    %1614 = vmatpush1.msra.mxu0 0.0
    %1615 = vmatprep.subr.mxu0 0.0
    %1616 = vmatpush1.msra.mxu0 0.0
    %1617 = vmatprep.mubr.f32.mxu0 0.0
    %1618 = vmatmul.mubr.f32.gmra.mrb[0].mxu0 %v1551
    %v1619 = vpop.f32.mrb[0].mxu0
    %v1620 = vadd.f32 0.0, %v1619
    %v1621 = vpop.f32.mrb[0].mxu0
    %1622 = vdwg.mxu0
    %v1623 = vadd.f32 %v68, %v1620
    %v1624 = vxor.u32 %v1623, 2147483648
    %v1625 = vmul.f32 %v1624, 1.442695
    %v1626 = vpow.pop %v1625
    %v1627 = vadd.f32 %v1626, 1.0
    %v1628 = vrcp.pop %v1627
    %v1629 = vmul.f32 1.0, %v1628
    %v1630 = vtanh.pop %v1623
    %v1631 = vmul.f32 %v1629, %v1427
    %1633 = vrot.lane.b32.xlu0 %v1630, 68
    %v1634 = vpop.permute.xlu0 %1633
    %v1636 = vmul.f32 %v1629, %v1634
    %1638 = vrot.lane.b32.xlu0 %v1636, 20
    %v1639 = vpop.permute.xlu0 %1638
    %v1641 = vadd.f32 %v1631, %v1639
    %v1642 = vtanh.pop %v1641
    %1644 = vrot.lane.b32.xlu0 %v1642, 20
    %v1645 = vpop.permute.xlu0 %1644
    %v1647 = vmul.f32 %v1629, %v1645
    %v1648 = vsel %vm260, %v1535, %v1519
    %v1650 = vsel %vm154, %v1648, 0
    %1652 = vmatprep.subr.mxu0 0.0
    %1653 = vmatpush1.msra.mxu0 %v48
    %1654 = vmatprep.subr.mxu0 0.0
    %1655 = vmatpush1.msra.mxu0 %v49
    %1656 = vmatprep.subr.mxu0 0.0
    %1657 = vmatpush1.msra.mxu0 %v50
    %1658 = vmatprep.subr.mxu0 0.0
    %1659 = vmatpush1.msra.mxu0 %v51
    %1660 = vmatprep.subr.mxu0 0.0
    %1661 = vmatpush1.msra.mxu0 %v52
    %1662 = vmatprep.subr.mxu0 0.0
    %1663 = vmatpush1.msra.mxu0 0.0
    %1664 = vmatprep.subr.mxu0 0.0
    %1665 = vmatpush1.msra.mxu0 0.0
    %1666 = vmatprep.subr.mxu0 0.0
    %1667 = vmatpush1.msra.mxu0 0.0
    %1668 = vmatprep.subr.mxu0 0.0
    %1669 = vmatpush1.msra.mxu0 0.0
    %1670 = vmatprep.subr.mxu0 0.0
    %1671 = vmatpush1.msra.mxu0 0.0
    %1672 = vmatprep.subr.mxu0 0.0
    %1673 = vmatpush1.msra.mxu0 0.0
    %1674 = vmatprep.subr.mxu0 0.0
    %1675 = vmatpush1.msra.mxu0 0.0
    %1676 = vmatprep.subr.mxu0 0.0
    %1677 = vmatpush1.msra.mxu0 0.0
    %1678 = vmatprep.subr.mxu0 0.0
    %1679 = vmatpush1.msra.mxu0 0.0
    %1680 = vmatprep.subr.mxu0 0.0
    %1681 = vmatpush1.msra.mxu0 0.0
    %1682 = vmatprep.subr.mxu0 0.0
    %1683 = vmatpush1.msra.mxu0 0.0
    %1684 = vmatprep.subr.mxu0 0.0
    %1685 = vmatpush1.msra.mxu0 0.0
    %1686 = vmatprep.subr.mxu0 0.0
    %1687 = vmatpush1.msra.mxu0 0.0
    %1688 = vmatprep.subr.mxu0 0.0
    %1689 = vmatpush1.msra.mxu0 0.0
    %1690 = vmatprep.subr.mxu0 0.0
    %1691 = vmatpush1.msra.mxu0 0.0
    %1692 = vmatprep.subr.mxu0 0.0
    %1693 = vmatpush1.msra.mxu0 0.0
    %1694 = vmatprep.subr.mxu0 0.0
    %1695 = vmatpush1.msra.mxu0 0.0
    %1696 = vmatprep.subr.mxu0 0.0
    %1697 = vmatpush1.msra.mxu0 0.0
    %1698 = vmatprep.subr.mxu0 0.0
    %1699 = vmatpush1.msra.mxu0 0.0
    %1700 = vmatprep.subr.mxu0 0.0
    %1701 = vmatpush1.msra.mxu0 0.0
    %1702 = vmatprep.subr.mxu0 0.0
    %1703 = vmatpush1.msra.mxu0 0.0
    %1704 = vmatprep.subr.mxu0 0.0
    %1705 = vmatpush1.msra.mxu0 0.0
    %1706 = vmatprep.subr.mxu0 0.0
    %1707 = vmatpush1.msra.mxu0 0.0
    %1708 = vmatprep.subr.mxu0 0.0
    %1709 = vmatpush1.msra.mxu0 0.0
    %1710 = vmatprep.subr.mxu0 0.0
    %1711 = vmatpush1.msra.mxu0 0.0
    %1712 = vmatprep.subr.mxu0 0.0
    %1713 = vmatpush1.msra.mxu0 0.0
    %1714 = vmatprep.subr.mxu0 0.0
    %1715 = vmatpush1.msra.mxu0 0.0
    %1716 = vmatprep.mubr.f32.mxu0 0.0
    %1717 = vmatmul.mubr.f32.gmra.mrb[0].mxu0 %v1650
    %v1718 = vpop.f32.mrb[0].mxu0
    %v1719 = vadd.f32 0.0, %v1718
    %v1720 = vpop.f32.mrb[0].mxu0
    %1721 = vdwg.mxu0
    %v1722 = vadd.f32 %v153, %v1719
    %v1723 = vxor.u32 %v1722, 2147483648
    %v1724 = vmul.f32 %v1723, 1.442695
    %v1725 = vpow.pop %v1724
    %v1726 = vadd.f32 %v1725, 1.0
    %v1727 = vrcp.pop %v1726
    %v1728 = vmul.f32 1.0, %v1727
    %v1729 = vtanh.pop %v1722
    %v1730 = vmul.f32 %v1728, %v1526
    %1732 = vrot.lane.b32.xlu0 %v1729, 68
    %v1733 = vpop.permute.xlu0 %1732
    %v1735 = vmul.f32 %v1728, %v1733
    %1737 = vrot.lane.b32.xlu0 %v1735, 20
    %v1738 = vpop.permute.xlu0 %1737
    %v1740 = vadd.f32 %v1730, %v1738
    %v1741 = vtanh.pop %v1740
    %1743 = vrot.lane.b32.xlu0 %v1741, 20
    %v1744 = vpop.permute.xlu0 %1743
    %v1746 = vmul.f32 %v1728, %v1744
    %1748 = vrot.lane.b32.xlu0 %v1746, 88
    %v1749 = vpop.permute.xlu0 %1748
    %1752 = vrot.lane.b32.xlu0 %v1647, 108
    %v1753 = vpop.permute.xlu0 %1752
    %1755 = vrot.lane.b32.xlu0 %v1729, 88
    %v1756 = vpop.permute.xlu0 %1755
    %1758 = vrot.lane.b32.xlu0 %v1630, 108
    %v1759 = vpop.permute.xlu0 %1758
    %v1761 = vsel %vm260, %v1749, %v1753
    %v1762 = vsel %vm154, %v1761, %v1756
    %v1763 = vsel %vm263, %v1762, %v1759
    %v1765 = vsel %vm265, %v1763, 0
    %1767 = vmatprep.subr.mxu0 0.0
    %1768 = vmatpush1.msra.mxu0 %v53
    %1769 = vmatprep.subr.mxu0 0.0
    %1770 = vmatpush1.msra.mxu0 %v54
    %1771 = vmatprep.subr.mxu0 0.0
    %1772 = vmatpush1.msra.mxu0 %v55
    %1773 = vmatprep.subr.mxu0 0.0
    %1774 = vmatpush1.msra.mxu0 %v56
    %1775 = vmatprep.subr.mxu0 0.0
    %1776 = vmatpush1.msra.mxu0 %v57
    %1777 = vmatprep.subr.mxu0 0.0
    %1778 = vmatpush1.msra.mxu0 %v58
    %1779 = vmatprep.subr.mxu0 0.0
    %1780 = vmatpush1.msra.mxu0 %v59
    %1781 = vmatprep.subr.mxu0 0.0
    %1782 = vmatpush1.msra.mxu0 %v60
    %1783 = vmatprep.subr.mxu0 0.0
    %1784 = vmatpush1.msra.mxu0 %v61
    %1785 = vmatprep.subr.mxu0 0.0
    %1786 = vmatpush1.msra.mxu0 %v62
    %1787 = vmatprep.subr.mxu0 0.0
    %1788 = vmatpush1.msra.mxu0 0.0
    %1789 = vmatprep.subr.mxu0 0.0
    %1790 = vmatpush1.msra.mxu0 0.0
    %1791 = vmatprep.subr.mxu0 0.0
    %1792 = vmatpush1.msra.mxu0 0.0
    %1793 = vmatprep.subr.mxu0 0.0
    %1794 = vmatpush1.msra.mxu0 0.0
    %1795 = vmatprep.subr.mxu0 0.0
    %1796 = vmatpush1.msra.mxu0 0.0
    %1797 = vmatprep.subr.mxu0 0.0
    %1798 = vmatpush1.msra.mxu0 0.0
    %1799 = vmatprep.subr.mxu0 0.0
    %1800 = vmatpush1.msra.mxu0 0.0
    %1801 = vmatprep.subr.mxu0 0.0
    %1802 = vmatpush1.msra.mxu0 0.0
    %1803 = vmatprep.subr.mxu0 0.0
    %1804 = vmatpush1.msra.mxu0 0.0
    %1805 = vmatprep.subr.mxu0 0.0
    %1806 = vmatpush1.msra.mxu0 0.0
    %1807 = vmatprep.subr.mxu0 0.0
    %1808 = vmatpush1.msra.mxu0 0.0
    %1809 = vmatprep.subr.mxu0 0.0
    %1810 = vmatpush1.msra.mxu0 0.0
    %1811 = vmatprep.subr.mxu0 0.0
    %1812 = vmatpush1.msra.mxu0 0.0
    %1813 = vmatprep.subr.mxu0 0.0
    %1814 = vmatpush1.msra.mxu0 0.0
    %1815 = vmatprep.subr.mxu0 0.0
    %1816 = vmatpush1.msra.mxu0 0.0
    %1817 = vmatprep.subr.mxu0 0.0
    %1818 = vmatpush1.msra.mxu0 0.0
    %1819 = vmatprep.subr.mxu0 0.0
    %1820 = vmatpush1.msra.mxu0 0.0
    %1821 = vmatprep.subr.mxu0 0.0
    %1822 = vmatpush1.msra.mxu0 0.0
    %1823 = vmatprep.subr.mxu0 0.0
    %1824 = vmatpush1.msra.mxu0 0.0
    %1825 = vmatprep.subr.mxu0 0.0
    %1826 = vmatpush1.msra.mxu0 0.0
    %1827 = vmatprep.subr.mxu0 0.0
    %1828 = vmatpush1.msra.mxu0 0.0
    %1829 = vmatprep.subr.mxu0 0.0
    %1830 = vmatpush1.msra.mxu0 0.0
    %1831 = vmatprep.mubr.f32.mxu0 0.0
    %1832 = vmatmul.mubr.f32.gmra.mrb[0].mxu0 %v1765
    %v1833 = vpop.f32.mrb[0].mxu0
    %v1834 = vadd.f32 0.0, %v1833
    %v1835 = vpop.f32.mrb[0].mxu0
    %1836 = vdwg.mxu0
    %v1837 = vadd.f32 %v68, %v1834
    %v1838 = vxor.u32 %v1837, 2147483648
    %v1839 = vmul.f32 %v1838, 1.442695
    %v1840 = vpow.pop %v1839
    %v1841 = vadd.f32 %v1840, 1.0
    %v1842 = vrcp.pop %v1841
    %v1843 = vmul.f32 1.0, %v1842
    %v1844 = vtanh.pop %v1837
    %v1845 = vmul.f32 %v1843, %v1641
    %1847 = vrot.lane.b32.xlu0 %v1844, 68
    %v1848 = vpop.permute.xlu0 %1847
    %v1850 = vmul.f32 %v1843, %v1848
    %1852 = vrot.lane.b32.xlu0 %v1850, 20
    %v1853 = vpop.permute.xlu0 %1852
    %v1855 = vadd.f32 %v1845, %v1853
    %v1856 = vtanh.pop %v1855
    %1858 = vrot.lane.b32.xlu0 %v1856, 20
    %v1859 = vpop.permute.xlu0 %1858
    %v1861 = vmul.f32 %v1843, %v1859
    %1863 = vrot.lane.b32.xlu0 %v1861, 88
    %v1864 = vpop.permute.xlu0 %1863
    %v1866 = vsel %vm260, %v1864, %v1848
    %v1867 = vld [vmem:[%s6] sm:$0xff]
    %v1868 = vld [vmem:[%s6 + $0x8] sm:$0xff]
    %v1869 = vld [vmem:[%s6 + $0x10] sm:$0xff]
    %v1870 = vld [vmem:[%s6 + $0x18] sm:$0xff]
    %v1871 = vld [vmem:[%s6 + $0x20] sm:$0xff]
    %v1872 = vld [vmem:[#allocation2] sm:$0x1]
    %v1874 = vlaneseq
    %v1875 = vshrl.u32 %v1874, 7
    %v1876 = vsub.s32 0, %v1875
    %v1877 = vrot.slane %v1872, %v1876
    %v1880 = vsel %vm154, %v1866, 0
    %1882 = vmatprep.subr.mxu0 0.0
    %1883 = vmatpush1.msra.mxu0 %v1867
    %1884 = vmatprep.subr.mxu0 0.0
    %1885 = vmatpush1.msra.mxu0 %v1868
    %1886 = vmatprep.subr.mxu0 0.0
    %1887 = vmatpush1.msra.mxu0 %v1869
    %1888 = vmatprep.subr.mxu0 0.0
    %1889 = vmatpush1.msra.mxu0 %v1870
    %1890 = vmatprep.subr.mxu0 0.0
    %1891 = vmatpush1.msra.mxu0 %v1871
    %1892 = vmatprep.subr.mxu0 0.0
    %1893 = vmatpush1.msra.mxu0 0.0
    %1894 = vmatprep.subr.mxu0 0.0
    %1895 = vmatpush1.msra.mxu0 0.0
    %1896 = vmatprep.subr.mxu0 0.0
    %1897 = vmatpush1.msra.mxu0 0.0
    %1898 = vmatprep.subr.mxu0 0.0
    %1899 = vmatpush1.msra.mxu0 0.0
    %1900 = vmatprep.subr.mxu0 0.0
    %1901 = vmatpush1.msra.mxu0 0.0
    %1902 = vmatprep.subr.mxu0 0.0
    %1903 = vmatpush1.msra.mxu0 0.0
    %1904 = vmatprep.subr.mxu0 0.0
    %1905 = vmatpush1.msra.mxu0 0.0
    %1906 = vmatprep.subr.mxu0 0.0
    %1907 = vmatpush1.msra.mxu0 0.0
    %1908 = vmatprep.subr.mxu0 0.0
    %1909 = vmatpush1.msra.mxu0 0.0
    %1910 = vmatprep.subr.mxu0 0.0
    %1911 = vmatpush1.msra.mxu0 0.0
    %1912 = vmatprep.subr.mxu0 0.0
    %1913 = vmatpush1.msra.mxu0 0.0
    %1914 = vmatprep.subr.mxu0 0.0
    %1915 = vmatpush1.msra.mxu0 0.0
    %1916 = vmatprep.subr.mxu0 0.0
    %1917 = vmatpush1.msra.mxu0 0.0
    %1918 = vmatprep.subr.mxu0 0.0
    %1919 = vmatpush1.msra.mxu0 0.0
    %1920 = vmatprep.subr.mxu0 0.0
    %1921 = vmatpush1.msra.mxu0 0.0
    %1922 = vmatprep.subr.mxu0 0.0
    %1923 = vmatpush1.msra.mxu0 0.0
    %1924 = vmatprep.subr.mxu0 0.0
    %1925 = vmatpush1.msra.mxu0 0.0
    %1926 = vmatprep.subr.mxu0 0.0
    %1927 = vmatpush1.msra.mxu0 0.0
    %1928 = vmatprep.subr.mxu0 0.0
    %1929 = vmatpush1.msra.mxu0 0.0
    %1930 = vmatprep.subr.mxu0 0.0
    %1931 = vmatpush1.msra.mxu0 0.0
    %1932 = vmatprep.subr.mxu0 0.0
    %1933 = vmatpush1.msra.mxu0 0.0
    %1934 = vmatprep.subr.mxu0 0.0
    %1935 = vmatpush1.msra.mxu0 0.0
    %1936 = vmatprep.subr.mxu0 0.0
    %1937 = vmatpush1.msra.mxu0 0.0
    %1938 = vmatprep.subr.mxu0 0.0
    %1939 = vmatpush1.msra.mxu0 0.0
    %1940 = vmatprep.subr.mxu0 0.0
    %1941 = vmatpush1.msra.mxu0 0.0
    %1942 = vmatprep.subr.mxu0 0.0
    %1943 = vmatpush1.msra.mxu0 0.0
    %1944 = vmatprep.subr.mxu0 0.0
    %1945 = vmatpush1.msra.mxu0 0.0
    %1946 = vmatprep.mubr.f32.mxu0 0.0
    %1947 = vmatmul.mubr.f32.gmra.mrb[0].mxu0 %v1880
    %v1948 = vpop.f32.mrb[0].mxu0
    %v1949 = vadd.f32 %v1877, %v1948
    %v1950 = vpop.f32.mrb[0].mxu0
    %1951 = vdwg.mxu0
    %v1952 = vmax.f32 %v1949, 0.0
    %vm1953 = vcmask 7168
    %1954 = vst.msk [vmem:[%s8] sm:$0xff] %vm1953, %v1952
    // Predicated region
    $region38: #{ensemble_forward.1} parent=1 // pred_check
      _
    $region39: #{ensemble_forward.1} parent=1 // pred_check_branch
      %1956 = sbr.rel (0) target = $region41
    $region40: #{ensemble_forward.1} parent=1 // pred_region
      _
    $region41: #{ensemble_forward.1} parent=1 // pred_fallthru
      _
    // Predicated region
    $region42: #{ensemble_forward.1} parent=1 // pred_check
      _
    $region43: #{ensemble_forward.1} parent=1 // pred_check_branch
      %1958 = sbr.rel (0) target = $region45
    $region44: #{ensemble_forward.1} parent=1 // pred_region
      _
    $region45: #{ensemble_forward.1} parent=1 // pred_fallthru
      _
    %1959 = vsyncpa [#allocation4], 1

</llo_original>
